<compile_context>
chip_gen: v5e
topology: v5e:2x2
jax: 0.10.0
libtpu: 0.0.40
codegen_flags: <defaults>
</compile_context>

<pallas_src>
import jax
import jax.numpy as jnp
import numpy as np
from jax.experimental import pallas as pl
from jax.experimental.pallas import tpu as pltpu

# ---- hyper-parameters mirroring VocabGraph.__init__ defaults ----
ATOM_SYMBOL_SIZE = 16
FEATURE_SIZE = 32
ATOM_EMB_DIM = 4          # atom_embedding_dim
GAT_HIDDEN = 16           # gat_hidden_dim (per head)
GAT_HEADS = 4             # gat_heads
NEG_SLOPE = 0.2           # GATConv default leaky_relu slope
NEG_INF = -1e30
OUT_LANES = ((FEATURE_SIZE + 127) // 128) * 128   # lane-dense output width (128)


def _vocab_graph_kernel(feat_ref, bias_ref, proj_ref, wpack_ref, out_ref):
    """One grid step = one block of G graphs stacked along the node axis."""
    F32 = jnp.float32
    hc = proj_ref.shape[1]                      # heads * hidden = 64
    n_heads = GAT_HEADS
    c = hc // n_heads
    out_lanes = wpack_ref.shape[1] - 2 * n_heads

    # Fused projection: [one_hot | frag | 1] @ [emb@W1@Wg ; W1@Wg ; b1@Wg]
    xp = jnp.dot(feat_ref[...], proj_ref[...], preferred_element_type=F32)      # [M, HC]

    # All heads' src/dst attention scores with ONE matmul against the packed
    # block-diagonal [HC, 2H] slab; one small [M,2H] transpose for the src side.
    a = jnp.dot(xp, wpack_ref[0:hc, out_lanes:out_lanes + 2 * n_heads],
                preferred_element_type=F32)                                      # [M, 2H]
    a_t = a.T                                                                    # [2H, M]

    # Additive mask: 0 on (self-loop / edge) entries, -1e30 elsewhere — also
    # blanks cross-graph entries, which is what makes node-axis batching legal.
    bias = bias_ref[...]                                                         # [M, M]

    head_outs = []
    for h in range(n_heads):
        # With M >= 128 each head's score matrix is already full-lane wide,
        # so no extra head packing is needed for VPU utilization.
        e = a[:, n_heads + h:n_heads + h + 1] + a_t[h:h + 1, :]                  # dst + src^T
        e = jnp.where(e >= 0, e, NEG_SLOPE * e)                                  # leaky_relu
        e = e + bias                                                             # mask off-edge
        e = e - jnp.max(e, axis=1, keepdims=True)                                # keep stabilization
        p = jnp.exp(e)                                                           # masked -> exactly 0
        inv = pl.reciprocal(jnp.sum(p, axis=1, keepdims=True), approx=True)
        head_outs.append(jnp.dot(p * inv, xp[:, h * c:(h + 1) * c],
                                 preferred_element_type=F32))                    # [M, C]

    out_all = jnp.concatenate(head_outs, axis=1)                                 # [M, HC]
    # Lane-dense (128-wide, unmasked vst) output: Wo zero-padded to 128 lanes,
    # bias row y0 = bg@Wo + bo folded in; wrapper slices [:, :FEATURE_SIZE].
    out_ref[...] = (jnp.dot(out_all, wpack_ref[0:hc, 0:out_lanes],
                            preferred_element_type=F32)
                    + wpack_ref[hc:hc + 1, 0:out_lanes])


@jax.jit
def _call_kernel(feats, bias, proj, wpack):
    x_rows, m = bias.shape
    n_blocks = x_rows // m
    kin = feats.shape[1]
    out_lanes = wpack.shape[1] - 2 * GAT_HEADS
    return pl.pallas_call(
        _vocab_graph_kernel,
        out_shape=jax.ShapeDtypeStruct((x_rows, out_lanes), jnp.float32),
        grid=(n_blocks,),
        in_specs=[pl.BlockSpec((m, kin), lambda b: (b, 0)),
                  pl.BlockSpec((m, m), lambda b: (b, 0)),
                  pl.BlockSpec(proj.shape, lambda b: (0, 0)),     # VMEM-resident weights
                  pl.BlockSpec(wpack.shape, lambda b: (0, 0))],
        out_specs=pl.BlockSpec((m, out_lanes), lambda b: (b, 0)),
        compiler_params=pltpu.CompilerParams(
            dimension_semantics=("parallel",)),
    )(feats, bias, proj, wpack)


def fold_params(params):
    """One-time host fold of all constant weight chains into 2 packed slabs."""
    e = ATOM_EMB_DIM
    heads, c = params["att_src"].shape
    hc = heads * c
    emb = np.asarray(params["emb"], np.float32)
    w1 = np.asarray(params["w1"], np.float32)
    b1 = np.asarray(params["b1"], np.float32)
    wg = np.asarray(params["wg"], np.float32)
    wo = np.asarray(params["wo"], np.float32)
    bo = np.asarray(params["bo"], np.float32)
    bg = np.asarray(params["bg"], np.float32)

    # proj: rows [0:V] emb@W1[:E]@Wg ; rows [V:V+3] W1[E:]@Wg ; last row b1@Wg
    proj = np.zeros((ATOM_SYMBOL_SIZE + 4, hc), np.float32)
    proj[:ATOM_SYMBOL_SIZE] = emb @ w1[:e] @ wg
    proj[ATOM_SYMBOL_SIZE:ATOM_SYMBOL_SIZE + 3] = w1[e:] @ wg
    proj[ATOM_SYMBOL_SIZE + 3] = (b1 @ wg)[0]

    # wpack: [0:HC, 0:128] = Wo zero-padded to 128 lanes
    #        [HC,   0:128] = y0 = bg@Wo + bo (zero-padded)
    #        [0:HC, 128:128+H]    = block-diag att_src
    #        [0:HC, 128+H:128+2H] = block-diag att_dst
    wpack = np.zeros((hc + 1, OUT_LANES + 2 * heads), np.float32)
    wpack[:hc, :FEATURE_SIZE] = wo
    wpack[hc, :FEATURE_SIZE] = (bg @ wo + bo)[0]
    att_s = np.asarray(params["att_src"], np.float32)
    att_d = np.asarray(params["att_dst"], np.float32)
    for h in range(heads):
        wpack[h * c:(h + 1) * c, OUT_LANES + h] = att_s[h]
        wpack[h * c:(h + 1) * c, OUT_LANES + heads + h] = att_d[h]

    return {"proj": jnp.asarray(proj), "wpack": jnp.asarray(wpack)}


def _pow2_at_least(x, lo):
    x = int(x)
    if x <= lo:
        return lo
    return 1 << (x - 1).bit_length()


def vocab_graph_forward(graph_seq, folded):
    """graph_seq: list of (node_tensor [N] int, edge_tensor [E,3] int,
    frag_bond_tensor [N,3] float).  Returns list of [N, feature_size]."""
    n_graphs = len(graph_seq)
    ns = [int(g[0].shape[0]) for g in graph_seq]
    n_pad = _pow2_at_least(max(ns), 8)

    # Pack G graphs per grid step so M = G*n_pad >= 128 rows per block.
    g_per_blk = max(1, 128 // n_pad)
    m = g_per_blk * n_pad
    # Block count bucketed to pow2 (-> jit-cache hits; even when >1 so v7x's
    # two TensorCores both get work via the "parallel" grid axis).
    n_blocks = _pow2_at_least(-(-n_graphs // g_per_blk), 1)
    x_rows = n_blocks * m
    kin = ATOM_SYMBOL_SIZE + 4

    # Host-side batched packing (numpy, no per-graph device dispatches).
    feats = np.zeros((x_rows, kin), np.float32)
    bias = np.full((x_rows, m), NEG_INF, np.float32)
    rows = np.arange(x_rows)
    bias[rows, rows % m] = 0.0          # self-loops for every node slot (incl. padding)

    row0 = []
    for g, (node_ids, edge_tensor, frag_bond) in enumerate(graph_seq):
        n = ns[g]
        r0 = (g // g_per_blk) * m + (g % g_per_blk) * n_pad
        c0 = (g % g_per_blk) * n_pad
        row0.append(r0)
        ids = np.asarray(node_ids, np.int64)
        feats[r0 + np.arange(n), ids] = 1.0                                  # one-hot atom id
        feats[r0:r0 + n, ATOM_SYMBOL_SIZE:ATOM_SYMBOL_SIZE + 3] = np.asarray(frag_bond, np.float32)
        feats[r0:r0 + n, ATOM_SYMBOL_SIZE + 3] = 1.0                         # folded-bias column
        edges = np.asarray(edge_tensor)
        if edges.shape[0] > 0 and n > 1:
            bias[r0 + edges[:, 1].astype(np.int64),
                 c0 + edges[:, 0].astype(np.int64)] = 0.0                    # row = dst, col = src

    out = _call_kernel(jnp.asarray(feats), jnp.asarray(bias),
                       folded["proj"], folded["wpack"])
    return [out[row0[g]:row0[g] + ns[g], :FEATURE_SIZE] for g in range(n_graphs)]


def _reference_single(node_ids, edge_tensor, frag_bond, params):
    """Plain-JAX reference of the same math (for correctness check)."""
    n = node_ids.shape[0]
    emb = params["emb"][node_ids]
    x = jnp.concatenate([emb, frag_bond.astype(jnp.float32)], axis=1)
    x = x @ params["w1"] + params["b1"]
    xp = x @ params["wg"]
    h_heads, c = params["att_src"].shape
    mask = jnp.zeros((n, n), jnp.float32)
    if edge_tensor.shape[0] > 0 and n > 1:
        mask = mask.at[edge_tensor[:, 1], edge_tensor[:, 0]].set(1.0)
    mask = mask.at[jnp.arange(n), jnp.arange(n)].set(1.0)
    heads = []
    for h in range(h_heads):
        xh = xp[:, h * c:(h + 1) * c]
        a_s = xh @ params["att_src"][h]
        a_d = xh @ params["att_dst"][h]
        e = a_d[:, None] + a_s[None, :]
        e = jnp.where(e >= 0, e, NEG_SLOPE * e)
        e = jnp.where(mask > 0, e, -1e30)
        e = e - e.max(axis=1, keepdims=True)
        p = jnp.where(mask > 0, jnp.exp(e), 0.0)
        attn = p / p.sum(axis=1, keepdims=True)
        heads.append(attn @ xh)
    gat = jnp.concatenate(heads, axis=1) + params["bg"]
    return gat @ params["wo"] + params["bo"]


if __name__ == "__main__":
    key = jax.random.PRNGKey(0)
    ks = jax.random.split(key, 12)
    D_IN = ATOM_EMB_DIM + 3
    params = {
        "emb": 0.1 * jax.random.normal(ks[0], (ATOM_SYMBOL_SIZE, ATOM_EMB_DIM), jnp.float32),
        "w1": 0.2 * jax.random.normal(ks[1], (D_IN, D_IN), jnp.float32),
        "b1": 0.05 * jax.random.normal(ks[2], (1, D_IN), jnp.float32),
        "wg": 0.2 * jax.random.normal(ks[3], (D_IN, GAT_HEADS * GAT_HIDDEN), jnp.float32),
        "att_src": 0.2 * jax.random.normal(ks[4], (GAT_HEADS, GAT_HIDDEN), jnp.float32),
        "att_dst": 0.2 * jax.random.normal(ks[5], (GAT_HEADS, GAT_HIDDEN), jnp.float32),
        "bg": 0.05 * jax.random.normal(ks[6], (1, GAT_HEADS * GAT_HIDDEN), jnp.float32),
        "wo": 0.2 * jax.random.normal(ks[7], (GAT_HEADS * GAT_HIDDEN, FEATURE_SIZE), jnp.float32),
        "bo": 0.05 * jax.random.normal(ks[8], (1, FEATURE_SIZE), jnp.float32),
    }
    folded = fold_params(params)

    # graph_seq: list of (node_tensor, edge_tensor[E,3] (src,dst,bond), frag_bond[N,3])
    g1_nodes = jnp.array([1, 3, 5, 7, 2], jnp.int32)
    g1_edges = jnp.array([[0, 1, 0], [1, 0, 0], [1, 2, 0], [2, 1, 0],
                          [2, 3, 0], [3, 2, 0], [3, 4, 0], [4, 3, 0]], jnp.int32)
    g1_frag = jax.random.normal(ks[9], (5, 3), jnp.float32)

    g2_nodes = jnp.array([4], jnp.int32)                       # single-node graph
    g2_edges = jnp.zeros((0, 3), jnp.int32)
    g2_frag = jax.random.normal(ks[10], (1, 3), jnp.float32)

    g3_nodes = jnp.array([0, 2, 4, 6, 8, 10, 12, 14, 1], jnp.int32)
    g3_edges = jnp.array([[0, 1, 0], [1, 2, 0], [2, 3, 0], [3, 4, 0], [4, 5, 0],
                          [5, 6, 0], [6, 7, 0], [7, 8, 0], [8, 0, 0]], jnp.int32)
    g3_frag = jax.random.normal(ks[11], (9, 3), jnp.float32)

    graph_seq = [(g1_nodes, g1_edges, g1_frag),
                 (g2_nodes, g2_edges, g2_frag),
                 (g3_nodes, g3_edges, g3_frag)]

    outs = vocab_graph_forward(graph_seq, folded)
    outs = [jax.block_until_ready(o) for o in outs]

    for (nodes, edges, frag), out in zip(graph_seq, outs):
        assert out.shape == (int(nodes.shape[0]), FEATURE_SIZE)
        ref = _reference_single(nodes, edges, frag, params)
        # tolerance leaves headroom for the EUP approx reciprocal in the softmax
        np.testing.assert_allclose(np.asarray(out), np.asarray(ref),
                                   rtol=5e-3, atol=5e-3)
    print("KERNEL_OK")
</pallas_src>

<mosaic_0001>
module attributes {stable_mosaic.version = 11 : i64} {
  func.func @_vocab_graph_kernel(%arg0: i32, %arg1: memref<128x20xf32, #tpu.memory_space<vmem>>, %arg2: memref<128x128xf32, #tpu.memory_space<vmem>>, %arg3: memref<20x64xf32, #tpu.memory_space<vmem>>, %arg4: memref<65x136xf32, #tpu.memory_space<vmem>>, %arg5: memref<128x128xf32, #tpu.memory_space<vmem>>) attributes {dimension_semantics = [#tpu.dimension_semantics<parallel>], iteration_bounds = array<i64: 1>, scalar_prefetch = 0 : i64, scratch_operands = 0 : i64, tpu.core_type = #tpu.core_type<tc>, window_params = [{transform_indices = @transform_0, window_bounds = array<i64: 128, 20>}, {transform_indices = @transform_1, window_bounds = array<i64: 128, 128>}, {pipeline_mode = #tpu.pipeline_mode<synchronous>, transform_indices = @transform_2, window_bounds = array<i64: 20, 64>}, {pipeline_mode = #tpu.pipeline_mode<synchronous>, transform_indices = @transform_3, window_bounds = array<i64: 65, 136>}, {transform_indices = @transform_4, window_bounds = array<i64: 128, 128>}]} {
    %c0 = arith.constant 0 : index
    %c0_0 = arith.constant 0 : index
    %0 = vector.load %arg1[%c0, %c0_0] : memref<128x20xf32, #tpu.memory_space<vmem>>, vector<128x20xf32>
    %c0_1 = arith.constant 0 : index
    %c0_2 = arith.constant 0 : index
    %1 = vector.load %arg3[%c0_1, %c0_2] : memref<20x64xf32, #tpu.memory_space<vmem>>, vector<20x64xf32>
    %cst = arith.constant dense<0.000000e+00> : vector<128x64xf32>
    %2 = tpu.matmul %0, %1, %cst {dimension_numbers = #tpu.dot_dimension_numbers<[1], [0], [0], [1], [0, 0, 1, 1], [], []>} : vector<128x20xf32>, vector<20x64xf32>, vector<128x64xf32> -> vector<128x64xf32>
    %c0_3 = arith.constant 0 : index
    %c128 = arith.constant 128 : index
    %3 = vector.load %arg4[%c0_3, %c128] : memref<65x136xf32, #tpu.memory_space<vmem>>, vector<64x8xf32>
    %cst_4 = arith.constant dense<0.000000e+00> : vector<128x8xf32>
    %4 = tpu.matmul %2, %3, %cst_4 {dimension_numbers = #tpu.dot_dimension_numbers<[1], [0], [0], [1], [0, 0, 1, 1], [], []>} : vector<128x64xf32>, vector<64x8xf32>, vector<128x8xf32> -> vector<128x8xf32>
    %5 = tpu.transpose %4, [1, 0] : vector<128x8xf32> -> vector<8x128xf32>
    %c0_5 = arith.constant 0 : index
    %c0_6 = arith.constant 0 : index
    %6 = vector.load %arg2[%c0_5, %c0_6] : memref<128x128xf32, #tpu.memory_space<vmem>>, vector<128x128xf32>
    %7 = vector.extract_strided_slice %4 {offsets = [0, 4], sizes = [128, 1], strides = [1, 1]} : vector<128x8xf32> to vector<128x1xf32>
    %8 = vector.extract_strided_slice %5 {offsets = [0, 0], sizes = [1, 128], strides = [1, 1]} : vector<8x128xf32> to vector<1x128xf32>
    %9 = vector.broadcast %7 : vector<128x1xf32> to vector<128x128xf32>
    %10 = vector.broadcast %8 : vector<1x128xf32> to vector<128x128xf32>
    %11 = arith.addf %9, %10 : vector<128x128xf32>
    %cst_7 = arith.constant 0.000000e+00 : f32
    %12 = vector.broadcast %cst_7 : f32 to vector<128x128xf32>
    %13 = arith.cmpf oge, %11, %12 : vector<128x128xf32>
    %cst_8 = arith.constant 2.000000e-01 : f32
    %14 = vector.broadcast %cst_8 : f32 to vector<128x128xf32>
    %15 = arith.mulf %14, %11 : vector<128x128xf32>
    %16 = arith.select %13, %11, %15 : vector<128x128xi1>, vector<128x128xf32>
    %17 = arith.addf %16, %6 : vector<128x128xf32>
    %cst_9 = arith.constant dense<0xFF800000> : vector<128xf32>
    %18 = vector.multi_reduction <maximumf>, %17, %cst_9 [1] : vector<128x128xf32> to vector<128xf32>
    %19 = vector.shape_cast %18 : vector<128xf32> to vector<128x1xf32>
    %20 = vector.broadcast %19 : vector<128x1xf32> to vector<128x128xf32>
    %21 = arith.subf %17, %20 : vector<128x128xf32>
    %22 = math.exp %21 : vector<128x128xf32>
    %cst_10 = arith.constant dense<0.000000e+00> : vector<128xf32>
    %23 = vector.multi_reduction <add>, %22, %cst_10 [1] : vector<128x128xf32> to vector<128xf32>
    %24 = vector.shape_cast %23 : vector<128xf32> to vector<128x1xf32>
    %25 = tpu.reciprocal %24 {approx = true} : vector<128x1xf32> -> vector<128x1xf32>
    %26 = vector.broadcast %25 : vector<128x1xf32> to vector<128x128xf32>
    %27 = arith.mulf %22, %26 : vector<128x128xf32>
    %28 = vector.extract_strided_slice %2 {offsets = [0, 0], sizes = [128, 16], strides = [1, 1]} : vector<128x64xf32> to vector<128x16xf32>
    %cst_11 = arith.constant dense<0.000000e+00> : vector<128x16xf32>
    %29 = tpu.matmul %27, %28, %cst_11 {dimension_numbers = #tpu.dot_dimension_numbers<[1], [0], [0], [1], [0, 0, 1, 1], [], []>} : vector<128x128xf32>, vector<128x16xf32>, vector<128x16xf32> -> vector<128x16xf32>
    %30 = vector.extract_strided_slice %4 {offsets = [0, 5], sizes = [128, 1], strides = [1, 1]} : vector<128x8xf32> to vector<128x1xf32>
    %31 = vector.extract_strided_slice %5 {offsets = [1, 0], sizes = [1, 128], strides = [1, 1]} : vector<8x128xf32> to vector<1x128xf32>
    %32 = vector.broadcast %30 : vector<128x1xf32> to vector<128x128xf32>
    %33 = vector.broadcast %31 : vector<1x128xf32> to vector<128x128xf32>
    %34 = arith.addf %32, %33 : vector<128x128xf32>
    %cst_12 = arith.constant 0.000000e+00 : f32
    %35 = vector.broadcast %cst_12 : f32 to vector<128x128xf32>
    %36 = arith.cmpf oge, %34, %35 : vector<128x128xf32>
    %cst_13 = arith.constant 2.000000e-01 : f32
    %37 = vector.broadcast %cst_13 : f32 to vector<128x128xf32>
    %38 = arith.mulf %37, %34 : vector<128x128xf32>
    %39 = arith.select %36, %34, %38 : vector<128x128xi1>, vector<128x128xf32>
    %40 = arith.addf %39, %6 : vector<128x128xf32>
    %cst_14 = arith.constant dense<0xFF800000> : vector<128xf32>
    %41 = vector.multi_reduction <maximumf>, %40, %cst_14 [1] : vector<128x128xf32> to vector<128xf32>
    %42 = vector.shape_cast %41 : vector<128xf32> to vector<128x1xf32>
    %43 = vector.broadcast %42 : vector<128x1xf32> to vector<128x128xf32>
    %44 = arith.subf %40, %43 : vector<128x128xf32>
    %45 = math.exp %44 : vector<128x128xf32>
    %cst_15 = arith.constant dense<0.000000e+00> : vector<128xf32>
    %46 = vector.multi_reduction <add>, %45, %cst_15 [1] : vector<128x128xf32> to vector<128xf32>
    %47 = vector.shape_cast %46 : vector<128xf32> to vector<128x1xf32>
    %48 = tpu.reciprocal %47 {approx = true} : vector<128x1xf32> -> vector<128x1xf32>
    %49 = vector.broadcast %48 : vector<128x1xf32> to vector<128x128xf32>
    %50 = arith.mulf %45, %49 : vector<128x128xf32>
    %51 = vector.extract_strided_slice %2 {offsets = [0, 16], sizes = [128, 16], strides = [1, 1]} : vector<128x64xf32> to vector<128x16xf32>
    %cst_16 = arith.constant dense<0.000000e+00> : vector<128x16xf32>
    %52 = tpu.matmul %50, %51, %cst_16 {dimension_numbers = #tpu.dot_dimension_numbers<[1], [0], [0], [1], [0, 0, 1, 1], [], []>} : vector<128x128xf32>, vector<128x16xf32>, vector<128x16xf32> -> vector<128x16xf32>
    %53 = vector.extract_strided_slice %4 {offsets = [0, 6], sizes = [128, 1], strides = [1, 1]} : vector<128x8xf32> to vector<128x1xf32>
    %54 = vector.extract_strided_slice %5 {offsets = [2, 0], sizes = [1, 128], strides = [1, 1]} : vector<8x128xf32> to vector<1x128xf32>
    %55 = vector.broadcast %53 : vector<128x1xf32> to vector<128x128xf32>
    %56 = vector.broadcast %54 : vector<1x128xf32> to vector<128x128xf32>
    %57 = arith.addf %55, %56 : vector<128x128xf32>
    %cst_17 = arith.constant 0.000000e+00 : f32
    %58 = vector.broadcast %cst_17 : f32 to vector<128x128xf32>
    %59 = arith.cmpf oge, %57, %58 : vector<128x128xf32>
    %cst_18 = arith.constant 2.000000e-01 : f32
    %60 = vector.broadcast %cst_18 : f32 to vector<128x128xf32>
    %61 = arith.mulf %60, %57 : vector<128x128xf32>
    %62 = arith.select %59, %57, %61 : vector<128x128xi1>, vector<128x128xf32>
    %63 = arith.addf %62, %6 : vector<128x128xf32>
    %cst_19 = arith.constant dense<0xFF800000> : vector<128xf32>
    %64 = vector.multi_reduction <maximumf>, %63, %cst_19 [1] : vector<128x128xf32> to vector<128xf32>
    %65 = vector.shape_cast %64 : vector<128xf32> to vector<128x1xf32>
    %66 = vector.broadcast %65 : vector<128x1xf32> to vector<128x128xf32>
    %67 = arith.subf %63, %66 : vector<128x128xf32>
    %68 = math.exp %67 : vector<128x128xf32>
    %cst_20 = arith.constant dense<0.000000e+00> : vector<128xf32>
    %69 = vector.multi_reduction <add>, %68, %cst_20 [1] : vector<128x128xf32> to vector<128xf32>
    %70 = vector.shape_cast %69 : vector<128xf32> to vector<128x1xf32>
    %71 = tpu.reciprocal %70 {approx = true} : vector<128x1xf32> -> vector<128x1xf32>
    %72 = vector.broadcast %71 : vector<128x1xf32> to vector<128x128xf32>
    %73 = arith.mulf %68, %72 : vector<128x128xf32>
    %74 = vector.extract_strided_slice %2 {offsets = [0, 32], sizes = [128, 16], strides = [1, 1]} : vector<128x64xf32> to vector<128x16xf32>
    %cst_21 = arith.constant dense<0.000000e+00> : vector<128x16xf32>
    %75 = tpu.matmul %73, %74, %cst_21 {dimension_numbers = #tpu.dot_dimension_numbers<[1], [0], [0], [1], [0, 0, 1, 1], [], []>} : vector<128x128xf32>, vector<128x16xf32>, vector<128x16xf32> -> vector<128x16xf32>
    %76 = vector.extract_strided_slice %4 {offsets = [0, 7], sizes = [128, 1], strides = [1, 1]} : vector<128x8xf32> to vector<128x1xf32>
    %77 = vector.extract_strided_slice %5 {offsets = [3, 0], sizes = [1, 128], strides = [1, 1]} : vector<8x128xf32> to vector<1x128xf32>
    %78 = vector.broadcast %76 : vector<128x1xf32> to vector<128x128xf32>
    %79 = vector.broadcast %77 : vector<1x128xf32> to vector<128x128xf32>
    %80 = arith.addf %78, %79 : vector<128x128xf32>
    %cst_22 = arith.constant 0.000000e+00 : f32
    %81 = vector.broadcast %cst_22 : f32 to vector<128x128xf32>
    %82 = arith.cmpf oge, %80, %81 : vector<128x128xf32>
    %cst_23 = arith.constant 2.000000e-01 : f32
    %83 = vector.broadcast %cst_23 : f32 to vector<128x128xf32>
    %84 = arith.mulf %83, %80 : vector<128x128xf32>
    %85 = arith.select %82, %80, %84 : vector<128x128xi1>, vector<128x128xf32>
    %86 = arith.addf %85, %6 : vector<128x128xf32>
    %cst_24 = arith.constant dense<0xFF800000> : vector<128xf32>
    %87 = vector.multi_reduction <maximumf>, %86, %cst_24 [1] : vector<128x128xf32> to vector<128xf32>
    %88 = vector.shape_cast %87 : vector<128xf32> to vector<128x1xf32>
    %89 = vector.broadcast %88 : vector<128x1xf32> to vector<128x128xf32>
    %90 = arith.subf %86, %89 : vector<128x128xf32>
    %91 = math.exp %90 : vector<128x128xf32>
    %cst_25 = arith.constant dense<0.000000e+00> : vector<128xf32>
    %92 = vector.multi_reduction <add>, %91, %cst_25 [1] : vector<128x128xf32> to vector<128xf32>
    %93 = vector.shape_cast %92 : vector<128xf32> to vector<128x1xf32>
    %94 = tpu.reciprocal %93 {approx = true} : vector<128x1xf32> -> vector<128x1xf32>
    %95 = vector.broadcast %94 : vector<128x1xf32> to vector<128x128xf32>
    %96 = arith.mulf %91, %95 : vector<128x128xf32>
    %97 = vector.extract_strided_slice %2 {offsets = [0, 48], sizes = [128, 16], strides = [1, 1]} : vector<128x64xf32> to vector<128x16xf32>
    %cst_26 = arith.constant dense<0.000000e+00> : vector<128x16xf32>
    %98 = tpu.matmul %96, %97, %cst_26 {dimension_numbers = #tpu.dot_dimension_numbers<[1], [0], [0], [1], [0, 0, 1, 1], [], []>} : vector<128x128xf32>, vector<128x16xf32>, vector<128x16xf32> -> vector<128x16xf32>
    %99 = tpu.concatenate %29, %52, %75, %98 in 1 : vector<128x16xf32>, vector<128x16xf32>, vector<128x16xf32>, vector<128x16xf32> -> vector<128x64xf32>
    %c0_27 = arith.constant 0 : index
    %c0_28 = arith.constant 0 : index
    %100 = vector.load %arg4[%c0_27, %c0_28] : memref<65x136xf32, #tpu.memory_space<vmem>>, vector<64x128xf32>
    %cst_29 = arith.constant dense<0.000000e+00> : vector<128x128xf32>
    %101 = tpu.matmul %99, %100, %cst_29 {dimension_numbers = #tpu.dot_dimension_numbers<[1], [0], [0], [1], [0, 0, 1, 1], [], []>} : vector<128x64xf32>, vector<64x128xf32>, vector<128x128xf32> -> vector<128x128xf32>
    %c64 = arith.constant 64 : index
    %c0_30 = arith.constant 0 : index
    %102 = vector.load %arg4[%c64, %c0_30] : memref<65x136xf32, #tpu.memory_space<vmem>>, vector<1x128xf32>
    %103 = vector.broadcast %102 : vector<1x128xf32> to vector<128x128xf32>
    %104 = arith.addf %101, %103 : vector<128x128xf32>
    %c0_31 = arith.constant 0 : index
    %c0_32 = arith.constant 0 : index
    %105 = vector.load %arg5[%c0_31, %c0_32] : memref<128x128xf32, #tpu.memory_space<vmem>>, vector<128x128xf32>
    tpu.vector_store %arg5[%c0_31, %c0_32], %104 {strides = array<i32>} : memref<128x128xf32, #tpu.memory_space<vmem>>, vector<128x128xf32>,
    return
  }
  func.func @transform_0(%arg0: i32) -> (i32, i32) {
    %c0_i32 = arith.constant 0 : i32
    %c0_i32_0 = arith.constant 0 : i32
    return %arg0, %c0_i32 : i32, i32
  }
  func.func @transform_1(%arg0: i32) -> (i32, i32) {
    %c0_i32 = arith.constant 0 : i32
    %c0_i32_0 = arith.constant 0 : i32
    return %arg0, %c0_i32 : i32, i32
  }
  func.func @transform_2(%arg0: i32) -> (i32, i32) {
    %c0_i32 = arith.constant 0 : i32
    %c0_i32_0 = arith.constant 0 : i32
    %c0_i32_1 = arith.constant 0 : i32
    return %c0_i32, %c0_i32_0 : i32, i32
  }
  func.func @transform_3(%arg0: i32) -> (i32, i32) {
    %c0_i32 = arith.constant 0 : i32
    %c0_i32_0 = arith.constant 0 : i32
    %c0_i32_1 = arith.constant 0 : i32
    return %c0_i32, %c0_i32_0 : i32, i32
  }
  func.func @transform_4(%arg0: i32) -> (i32, i32) {
    %c0_i32 = arith.constant 0 : i32
    %c0_i32_0 = arith.constant 0 : i32
    return %arg0, %c0_i32 : i32, i32
  }
}

</mosaic_0001>

<llo_original>
// kernel: _call_kernel.1
$region0: #{_call_kernel.1}
  #allocation0 [shape = 'u32[]', space=smem, size = 0x4, offset = 0x4, fixed_abs, tag = 'smem constant byte address 0x4 - core index']
  #allocation1 [shape = 'u32[72,128]{1,0:T(1,128)}', space=vmem, size = 0x9000, scoped, tag = 'internal scratch']
  %s0 = inlined_call_operand.vmem [shape: f32[128,20], index: 0, kind: input, shape index: {}]
  %s1 = inlined_call_operand.vmem [shape: f32[128,128], index: 1, kind: input, shape index: {}]
  %s2 = inlined_call_operand.vmem [shape: f32[20,64], index: 2, kind: input, shape index: {}]
  %s3 = inlined_call_operand.vmem [shape: f32[65,136], index: 3, kind: input, shape index: {}]
  %s4 = inlined_call_operand.hbm [shape: f32[128,128], index: 4, kind: output, shape index: {}]
  %s5 = sld [smem:[#allocation0]]
  $region26: #{_call_kernel.1} parent=0
    _
  %s7 = ssub.s32 1, %s5
  %s8 = scalar_select 0, %s7, %s5
  $region1: #{_call_kernel.1} parent=0
    #allocation2 [shape = 'u8[65536]{0}', space=vmem, size = 0x10000, scoped, tag = 'output window, operand 0, single buffered']
    #allocation3 [shape = 's32[1]{0}', space=sflag, size = 0x4, scoped, tag = 'scoped memory for _call_kernel.1']
    %9 = vsyncpa [#allocation3], 0
    // Predicated region
    $region2: #{_call_kernel.1} parent=1 // pred_check
      _
    $region3: #{_call_kernel.1} parent=1 // pred_check_branch
      %11 = sbr.rel (0) target = $region5
    $region4: #{_call_kernel.1} parent=1 // pred_region
      _
    $region5: #{_call_kernel.1} parent=1 // pred_fallthru
      _
    // Predicated region
    $region6: #{_call_kernel.1} parent=1 // pred_check
      _
    $region7: #{_call_kernel.1} parent=1 // pred_check_branch
      %13 = sbr.rel (0) target = $region9
    $region8: #{_call_kernel.1} parent=1 // pred_region
      _
    $region9: #{_call_kernel.1} parent=1 // pred_fallthru
      _
    // Predicated region
    $region10: #{_call_kernel.1} parent=1 // pred_check
      _
    $region11: #{_call_kernel.1} parent=1 // pred_check_branch
      %15 = sbr.rel (0) target = $region13
    $region12: #{_call_kernel.1} parent=1 // pred_region
      _
    $region13: #{_call_kernel.1} parent=1 // pred_fallthru
      _
    // Predicated region
    $region14: #{_call_kernel.1} parent=1 // pred_check
      _
    $region15: #{_call_kernel.1} parent=1 // pred_check_branch
      %17 = sbr.rel (0) target = $region17
    $region16: #{_call_kernel.1} parent=1 // pred_region
      _
    $region17: #{_call_kernel.1} parent=1 // pred_fallthru
      _
    %v18 = vld [vmem:[%s0] sm:$0xff]
    %v19 = vld [vmem:[%s0 + $0x8] sm:$0xff]
    %v20 = vld [vmem:[%s0 + $0x10] sm:$0xff]
    %v21 = vld [vmem:[%s0 + $0x18] sm:$0xff]
    %v22 = vld [vmem:[%s0 + $0x20] sm:$0xff]
    %v23 = vld [vmem:[%s0 + $0x28] sm:$0xff]
    %v24 = vld [vmem:[%s0 + $0x30] sm:$0xff]
    %v25 = vld [vmem:[%s0 + $0x38] sm:$0xff]
    %v26 = vld [vmem:[%s0 + $0x40] sm:$0xff]
    %v27 = vld [vmem:[%s0 + $0x48] sm:$0xff]
    %v28 = vld [vmem:[%s0 + $0x50] sm:$0xff]
    %v29 = vld [vmem:[%s0 + $0x58] sm:$0xff]
    %v30 = vld [vmem:[%s0 + $0x60] sm:$0xff]
    %v31 = vld [vmem:[%s0 + $0x68] sm:$0xff]
    %v32 = vld [vmem:[%s0 + $0x70] sm:$0xff]
    %v33 = vld [vmem:[%s0 + $0x78] sm:$0xff]
    %v34 = vld [vmem:[%s2] sm:$0xff]
    %v35 = vld [vmem:[%s2 + $0x8] sm:$0xff]
    %v36 = vld [vmem:[%s2 + $0x10] sm:$0xf]
    %vm37 = vcmask 162816
    %v39 = vsel %vm37, %v18, 0
    %v42 = vsel %vm37, %v19, 0
    %v45 = vsel %vm37, %v20, 0
    %v48 = vsel %vm37, %v21, 0
    %v51 = vsel %vm37, %v22, 0
    %v54 = vsel %vm37, %v23, 0
    %v57 = vsel %vm37, %v24, 0
    %v60 = vsel %vm37, %v25, 0
    %v63 = vsel %vm37, %v26, 0
    %v66 = vsel %vm37, %v27, 0
    %v69 = vsel %vm37, %v28, 0
    %v72 = vsel %vm37, %v29, 0
    %v75 = vsel %vm37, %v30, 0
    %v78 = vsel %vm37, %v31, 0
    %v81 = vsel %vm37, %v32, 0
    %v84 = vsel %vm37, %v33, 0
    %vm86 = vcmask 1043456
    %v88 = vsel %vm86, %v36, 0
    %90 = vmatpush.msra.mxu0 0.0
    %91 = vmatpush.msra.mxu0 0.0
    %92 = vmatpush.msra.mxu0 0.0
    %93 = vmatpush.msra.mxu0 0.0
    %94 = vmatpush.msra.mxu0 0.0
    %95 = vmatpush.msra.mxu0 0.0
    %96 = vmatpush.msra.mxu0 0.0
    %97 = vmatpush.msra.mxu0 0.0
    %98 = vmatpush.msra.mxu0 0.0
    %99 = vmatpush.msra.mxu0 0.0
    %100 = vmatpush.msra.mxu0 0.0
    %101 = vmatpush.msra.mxu0 0.0
    %102 = vmatpush.msra.mxu0 0.0
    %103 = vmatpush.msra.mxu0 %v88
    %104 = vmatpush.msra.mxu0 %v35
    %105 = vmatpush.msra.mxu0 %v34
    %106 = vmatmul.f32.gmra.mxu0 %v39
    %v107 = vpop.f32.mrf.mxu0
    %v108 = vadd.f32 0.0, %v107
    %109 = vmatmul.f32.gmra.mxu0 %v42
    %v110 = vpop.f32.mrf.mxu0
    %v111 = vadd.f32 0.0, %v110
    %112 = vmatmul.f32.gmra.mxu0 %v45
    %v113 = vpop.f32.mrf.mxu0
    %v114 = vadd.f32 0.0, %v113
    %115 = vmatmul.f32.gmra.mxu0 %v48
    %v116 = vpop.f32.mrf.mxu0
    %v117 = vadd.f32 0.0, %v116
    %118 = vmatmul.f32.gmra.mxu0 %v51
    %v119 = vpop.f32.mrf.mxu0
    %v120 = vadd.f32 0.0, %v119
    %121 = vmatmul.f32.gmra.mxu0 %v54
    %v122 = vpop.f32.mrf.mxu0
    %v123 = vadd.f32 0.0, %v122
    %124 = vmatmul.f32.gmra.mxu0 %v57
    %v125 = vpop.f32.mrf.mxu0
    %v126 = vadd.f32 0.0, %v125
    %127 = vmatmul.f32.gmra.mxu0 %v60
    %v128 = vpop.f32.mrf.mxu0
    %v129 = vadd.f32 0.0, %v128
    %130 = vmatmul.f32.gmra.mxu0 %v63
    %v131 = vpop.f32.mrf.mxu0
    %v132 = vadd.f32 0.0, %v131
    %133 = vmatmul.f32.gmra.mxu0 %v66
    %v134 = vpop.f32.mrf.mxu0
    %v135 = vadd.f32 0.0, %v134
    %136 = vmatmul.f32.gmra.mxu0 %v69
    %v137 = vpop.f32.mrf.mxu0
    %v138 = vadd.f32 0.0, %v137
    %139 = vmatmul.f32.gmra.mxu0 %v72
    %v140 = vpop.f32.mrf.mxu0
    %v141 = vadd.f32 0.0, %v140
    %142 = vmatmul.f32.gmra.mxu0 %v75
    %v143 = vpop.f32.mrf.mxu0
    %v144 = vadd.f32 0.0, %v143
    %145 = vmatmul.f32.gmra.mxu0 %v78
    %v146 = vpop.f32.mrf.mxu0
    %v147 = vadd.f32 0.0, %v146
    %148 = vmatmul.f32.gmra.mxu0 %v81
    %v149 = vpop.f32.mrf.mxu0
    %v150 = vadd.f32 0.0, %v149
    %151 = vmatmul.f32.gmra.mxu0 %v84
    %v152 = vpop.f32.mrf.mxu0
    %v153 = vadd.f32 0.0, %v152
    %154 = vdwg.mxu0
    %v155 = vld [vmem:[%s3 + $0x8] sm:$0xff]
    %v156 = vld [vmem:[%s3 + $0x18] sm:$0xff]
    %v157 = vld [vmem:[%s3 + $0x28] sm:$0xff]
    %v158 = vld [vmem:[%s3 + $0x38] sm:$0xff]
    %v159 = vld [vmem:[%s3 + $0x48] sm:$0xff]
    %v160 = vld [vmem:[%s3 + $0x58] sm:$0xff]
    %v161 = vld [vmem:[%s3 + $0x68] sm:$0xff]
    %v162 = vld [vmem:[%s3 + $0x78] sm:$0xff]
    %vm163 = vcmask 523264
    %v165 = vsel %vm163, %v108, 0
    %v168 = vsel %vm163, %v111, 0
    %v171 = vsel %vm163, %v114, 0
    %v174 = vsel %vm163, %v117, 0
    %v177 = vsel %vm163, %v120, 0
    %v180 = vsel %vm163, %v123, 0
    %v183 = vsel %vm163, %v126, 0
    %v186 = vsel %vm163, %v129, 0
    %v189 = vsel %vm163, %v132, 0
    %v192 = vsel %vm163, %v135, 0
    %v195 = vsel %vm163, %v138, 0
    %v198 = vsel %vm163, %v141, 0
    %v201 = vsel %vm163, %v144, 0
    %v204 = vsel %vm163, %v147, 0
    %v207 = vsel %vm163, %v150, 0
    %v210 = vsel %vm163, %v153, 0
    %212 = vmatpush.msra.mxu0 0.0
    %213 = vmatpush.msra.mxu0 0.0
    %214 = vmatpush.msra.mxu0 0.0
    %215 = vmatpush.msra.mxu0 0.0
    %216 = vmatpush.msra.mxu0 0.0
    %217 = vmatpush.msra.mxu0 0.0
    %218 = vmatpush.msra.mxu0 0.0
    %219 = vmatpush.msra.mxu0 0.0
    %220 = vmatpush.msra.mxu0 %v162
    %221 = vmatpush.msra.mxu0 %v161
    %222 = vmatpush.msra.mxu0 %v160
    %223 = vmatpush.msra.mxu0 %v159
    %224 = vmatpush.msra.mxu0 %v158
    %225 = vmatpush.msra.mxu0 %v157
    %226 = vmatpush.msra.mxu0 %v156
    %227 = vmatpush.msra.mxu0 %v155
    %228 = vmatmul.f32.gmra.mxu0 %v165
    %v229 = vpop.f32.mrf.mxu0
    %v230 = vadd.f32 0.0, %v229
    %231 = vmatmul.f32.gmra.mxu0 %v168
    %v232 = vpop.f32.mrf.mxu0
    %v233 = vadd.f32 0.0, %v232
    %234 = vmatmul.f32.gmra.mxu0 %v171
    %v235 = vpop.f32.mrf.mxu0
    %v236 = vadd.f32 0.0, %v235
    %237 = vmatmul.f32.gmra.mxu0 %v174
    %v238 = vpop.f32.mrf.mxu0
    %v239 = vadd.f32 0.0, %v238
    %240 = vmatmul.f32.gmra.mxu0 %v177
    %v241 = vpop.f32.mrf.mxu0
    %v242 = vadd.f32 0.0, %v241
    %243 = vmatmul.f32.gmra.mxu0 %v180
    %v244 = vpop.f32.mrf.mxu0
    %v245 = vadd.f32 0.0, %v244
    %246 = vmatmul.f32.gmra.mxu0 %v183
    %v247 = vpop.f32.mrf.mxu0
    %v248 = vadd.f32 0.0, %v247
    %249 = vmatmul.f32.gmra.mxu0 %v186
    %v250 = vpop.f32.mrf.mxu0
    %v251 = vadd.f32 0.0, %v250
    %252 = vmatmul.f32.gmra.mxu0 %v189
    %v253 = vpop.f32.mrf.mxu0
    %v254 = vadd.f32 0.0, %v253
    %255 = vmatmul.f32.gmra.mxu0 %v192
    %v256 = vpop.f32.mrf.mxu0
    %v257 = vadd.f32 0.0, %v256
    %258 = vmatmul.f32.gmra.mxu0 %v195
    %v259 = vpop.f32.mrf.mxu0
    %v260 = vadd.f32 0.0, %v259
    %261 = vmatmul.f32.gmra.mxu0 %v198
    %v262 = vpop.f32.mrf.mxu0
    %v263 = vadd.f32 0.0, %v262
    %264 = vmatmul.f32.gmra.mxu0 %v201
    %v265 = vpop.f32.mrf.mxu0
    %v266 = vadd.f32 0.0, %v265
    %267 = vmatmul.f32.gmra.mxu0 %v204
    %v268 = vpop.f32.mrf.mxu0
    %v269 = vadd.f32 0.0, %v268
    %270 = vmatmul.f32.gmra.mxu0 %v207
    %v271 = vpop.f32.mrf.mxu0
    %v272 = vadd.f32 0.0, %v271
    %273 = vmatmul.f32.gmra.mxu0 %v210
    %v274 = vpop.f32.mrf.mxu0
    %v275 = vadd.f32 0.0, %v274
    %276 = vdwg.mxu0
    %277 = vxpose.xlu0.b32.start [1/16] %v230, 128
    %278 = vxpose.xlu0.b32.cont [2/16] %v233, 128
    %279 = vxpose.xlu0.b32.cont [3/16] %v236, 128
    %280 = vxpose.xlu0.b32.cont [4/16] %v239, 128
    %281 = vxpose.xlu0.b32.cont [5/16] %v242, 128
    %282 = vxpose.xlu0.b32.cont [6/16] %v245, 128
    %283 = vxpose.xlu0.b32.cont [7/16] %v248, 128
    %284 = vxpose.xlu0.b32.cont [8/16] %v251, 128
    %285 = vxpose.xlu0.b32.cont [9/16] %v254, 128
    %286 = vxpose.xlu0.b32.cont [10/16] %v257, 128
    %287 = vxpose.xlu0.b32.cont [11/16] %v260, 128
    %288 = vxpose.xlu0.b32.cont [12/16] %v263, 128
    %289 = vxpose.xlu0.b32.cont [13/16] %v266, 128
    %290 = vxpose.xlu0.b32.cont [14/16] %v269, 128
    %291 = vxpose.xlu0.b32.cont [15/16] %v272, 128
    %292 = vxpose.xlu0.b32.end [16/16] %v275, 128
    %v293 = vpop.trf.xlu0
    %v294 = vpop.trf.xlu0
    %v295 = vpop.trf.xlu0
    %v296 = vpop.trf.xlu0
    %v297 = vpop.trf.xlu0
    %v298 = vpop.trf.xlu0
    %v299 = vpop.trf.xlu0
    %v300 = vpop.trf.xlu0
    %v301 = vpop.trf.xlu0
    %v302 = vpop.trf.xlu0
    %v303 = vpop.trf.xlu0
    %v304 = vpop.trf.xlu0
    %v305 = vpop.trf.xlu0
    %v306 = vpop.trf.xlu0
    %v307 = vpop.trf.xlu0
    %v308 = vpop.trf.xlu0
    %v309 = vld [vmem:[%s1] sm:$0xff]
    %v310 = vld [vmem:[%s1 + $0x8] sm:$0xff]
    %v311 = vld [vmem:[%s1 + $0x10] sm:$0xff]
    %v312 = vld [vmem:[%s1 + $0x18] sm:$0xff]
    %v313 = vld [vmem:[%s1 + $0x20] sm:$0xff]
    %v314 = vld [vmem:[%s1 + $0x28] sm:$0xff]
    %v315 = vld [vmem:[%s1 + $0x30] sm:$0xff]
    %v316 = vld [vmem:[%s1 + $0x38] sm:$0xff]
    %v317 = vld [vmem:[%s1 + $0x40] sm:$0xff]
    %v318 = vld [vmem:[%s1 + $0x48] sm:$0xff]
    %v319 = vld [vmem:[%s1 + $0x50] sm:$0xff]
    %v320 = vld [vmem:[%s1 + $0x58] sm:$0xff]
    %v321 = vld [vmem:[%s1 + $0x60] sm:$0xff]
    %v322 = vld [vmem:[%s1 + $0x68] sm:$0xff]
    %v323 = vld [vmem:[%s1 + $0x70] sm:$0xff]
    %v324 = vld [vmem:[%s1 + $0x78] sm:$0xff]
    %326 = vset.pattern.permute.xlu0 4
    %327 = vperm.xlu0 %326, %v230
    %v328 = vpop.permute.xlu0 %327
    %331 = vset.pattern.permute.xlu0 4
    %332 = vperm.xlu0 %331, %v233
    %v333 = vpop.permute.xlu0 %332
    %336 = vset.pattern.permute.xlu0 4
    %337 = vperm.xlu0 %336, %v236
    %v338 = vpop.permute.xlu0 %337
    %341 = vset.pattern.permute.xlu0 4
    %342 = vperm.xlu0 %341, %v239
    %v343 = vpop.permute.xlu0 %342
    %346 = vset.pattern.permute.xlu0 4
    %347 = vperm.xlu0 %346, %v242
    %v348 = vpop.permute.xlu0 %347
    %351 = vset.pattern.permute.xlu0 4
    %352 = vperm.xlu0 %351, %v245
    %v353 = vpop.permute.xlu0 %352
    %356 = vset.pattern.permute.xlu0 4
    %357 = vperm.xlu0 %356, %v248
    %v358 = vpop.permute.xlu0 %357
    %361 = vset.pattern.permute.xlu0 4
    %362 = vperm.xlu0 %361, %v251
    %v363 = vpop.permute.xlu0 %362
    %366 = vset.pattern.permute.xlu0 4
    %367 = vperm.xlu0 %366, %v254
    %v368 = vpop.permute.xlu0 %367
    %371 = vset.pattern.permute.xlu0 4
    %372 = vperm.xlu0 %371, %v257
    %v373 = vpop.permute.xlu0 %372
    %376 = vset.pattern.permute.xlu0 4
    %377 = vperm.xlu0 %376, %v260
    %v378 = vpop.permute.xlu0 %377
    %381 = vset.pattern.permute.xlu0 4
    %382 = vperm.xlu0 %381, %v263
    %v383 = vpop.permute.xlu0 %382
    %386 = vset.pattern.permute.xlu0 4
    %387 = vperm.xlu0 %386, %v266
    %v388 = vpop.permute.xlu0 %387
    %391 = vset.pattern.permute.xlu0 4
    %392 = vperm.xlu0 %391, %v269
    %v393 = vpop.permute.xlu0 %392
    %396 = vset.pattern.permute.xlu0 4
    %397 = vperm.xlu0 %396, %v272
    %v398 = vpop.permute.xlu0 %397
    %401 = vset.pattern.permute.xlu0 4
    %402 = vperm.xlu0 %401, %v275
    %v403 = vpop.permute.xlu0 %402
    %v405 = vperm.slane %v293, 0
    %v406 = vadd.f32 %v328, %v405
    %v407 = vadd.f32 %v333, %v405
    %v408 = vadd.f32 %v338, %v405
    %v409 = vadd.f32 %v343, %v405
    %v410 = vadd.f32 %v348, %v405
    %v411 = vadd.f32 %v353, %v405
    %v412 = vadd.f32 %v358, %v405
    %v413 = vadd.f32 %v363, %v405
    %v414 = vadd.f32 %v368, %v405
    %v415 = vadd.f32 %v373, %v405
    %v416 = vadd.f32 %v378, %v405
    %v417 = vadd.f32 %v383, %v405
    %v418 = vadd.f32 %v388, %v405
    %v419 = vadd.f32 %v393, %v405
    %v420 = vadd.f32 %v398, %v405
    %v421 = vadd.f32 %v403, %v405
    %vm422 = vcmp.ge.f32.partialorder %v406, 0.0
    %vm423 = vcmp.ge.f32.partialorder %v407, 0.0
    %vm424 = vcmp.ge.f32.partialorder %v408, 0.0
    %vm425 = vcmp.ge.f32.partialorder %v409, 0.0
    %vm426 = vcmp.ge.f32.partialorder %v410, 0.0
    %vm427 = vcmp.ge.f32.partialorder %v411, 0.0
    %vm428 = vcmp.ge.f32.partialorder %v412, 0.0
    %vm429 = vcmp.ge.f32.partialorder %v413, 0.0
    %vm430 = vcmp.ge.f32.partialorder %v414, 0.0
    %vm431 = vcmp.ge.f32.partialorder %v415, 0.0
    %vm432 = vcmp.ge.f32.partialorder %v416, 0.0
    %vm433 = vcmp.ge.f32.partialorder %v417, 0.0
    %vm434 = vcmp.ge.f32.partialorder %v418, 0.0
    %vm435 = vcmp.ge.f32.partialorder %v419, 0.0
    %vm436 = vcmp.ge.f32.partialorder %v420, 0.0
    %vm437 = vcmp.ge.f32.partialorder %v421, 0.0
    %v438 = vmul.f32 %v406, 0.2
    %v439 = vmul.f32 %v407, 0.2
    %v440 = vmul.f32 %v408, 0.2
    %v441 = vmul.f32 %v409, 0.2
    %v442 = vmul.f32 %v410, 0.2
    %v443 = vmul.f32 %v411, 0.2
    %v444 = vmul.f32 %v412, 0.2
    %v445 = vmul.f32 %v413, 0.2
    %v446 = vmul.f32 %v414, 0.2
    %v447 = vmul.f32 %v415, 0.2
    %v448 = vmul.f32 %v416, 0.2
    %v449 = vmul.f32 %v417, 0.2
    %v450 = vmul.f32 %v418, 0.2
    %v451 = vmul.f32 %v419, 0.2
    %v452 = vmul.f32 %v420, 0.2
    %v453 = vmul.f32 %v421, 0.2
    %v454 = vsel %vm422, %v406, %v438
    %v455 = vsel %vm423, %v407, %v439
    %v456 = vsel %vm424, %v408, %v440
    %v457 = vsel %vm425, %v409, %v441
    %v458 = vsel %vm426, %v410, %v442
    %v459 = vsel %vm427, %v411, %v443
    %v460 = vsel %vm428, %v412, %v444
    %v461 = vsel %vm429, %v413, %v445
    %v462 = vsel %vm430, %v414, %v446
    %v463 = vsel %vm431, %v415, %v447
    %v464 = vsel %vm432, %v416, %v448
    %v465 = vsel %vm433, %v417, %v449
    %v466 = vsel %vm434, %v418, %v450
    %v467 = vsel %vm435, %v419, %v451
    %v468 = vsel %vm436, %v420, %v452
    %v469 = vsel %vm437, %v421, %v453
    %v470 = vadd.f32 %v454, %v309
    %v471 = vadd.f32 %v455, %v310
    %v472 = vadd.f32 %v456, %v311
    %v473 = vadd.f32 %v457, %v312
    %v474 = vadd.f32 %v458, %v313
    %v475 = vadd.f32 %v459, %v314
    %v476 = vadd.f32 %v460, %v315
    %v477 = vadd.f32 %v461, %v316
    %v478 = vadd.f32 %v462, %v317
    %v479 = vadd.f32 %v463, %v318
    %v480 = vadd.f32 %v464, %v319
    %v481 = vadd.f32 %v465, %v320
    %v482 = vadd.f32 %v466, %v321
    %v483 = vadd.f32 %v467, %v322
    %v484 = vadd.f32 %v468, %v323
    %v485 = vadd.f32 %v469, %v324
    %486 = vmax.xlane.f32.xlu0 %v470
    %v487 = vpop.xlane.xlu0 %486
    %488 = vmax.xlane.f32.xlu0 %v471
    %v489 = vpop.xlane.xlu0 %488
    %490 = vmax.xlane.f32.xlu0 %v472
    %v491 = vpop.xlane.xlu0 %490
    %492 = vmax.xlane.f32.xlu0 %v473
    %v493 = vpop.xlane.xlu0 %492
    %494 = vmax.xlane.f32.xlu0 %v474
    %v495 = vpop.xlane.xlu0 %494
    %496 = vmax.xlane.f32.xlu0 %v475
    %v497 = vpop.xlane.xlu0 %496
    %498 = vmax.xlane.f32.xlu0 %v476
    %v499 = vpop.xlane.xlu0 %498
    %500 = vmax.xlane.f32.xlu0 %v477
    %v501 = vpop.xlane.xlu0 %500
    %502 = vmax.xlane.f32.xlu0 %v478
    %v503 = vpop.xlane.xlu0 %502
    %504 = vmax.xlane.f32.xlu0 %v479
    %v505 = vpop.xlane.xlu0 %504
    %506 = vmax.xlane.f32.xlu0 %v480
    %v507 = vpop.xlane.xlu0 %506
    %508 = vmax.xlane.f32.xlu0 %v481
    %v509 = vpop.xlane.xlu0 %508
    %510 = vmax.xlane.f32.xlu0 %v482
    %v511 = vpop.xlane.xlu0 %510
    %512 = vmax.xlane.f32.xlu0 %v483
    %v513 = vpop.xlane.xlu0 %512
    %514 = vmax.xlane.f32.xlu0 %v484
    %v515 = vpop.xlane.xlu0 %514
    %516 = vmax.xlane.f32.xlu0 %v485
    %v517 = vpop.xlane.xlu0 %516
    %v518 = vsub.f32 %v470, %v487
    %v519 = vsub.f32 %v471, %v489
    %v520 = vsub.f32 %v472, %v491
    %v521 = vsub.f32 %v473, %v493
    %v522 = vsub.f32 %v474, %v495
    %v523 = vsub.f32 %v475, %v497
    %v524 = vsub.f32 %v476, %v499
    %v525 = vsub.f32 %v477, %v501
    %v526 = vsub.f32 %v478, %v503
    %v527 = vsub.f32 %v479, %v505
    %v528 = vsub.f32 %v480, %v507
    %v529 = vsub.f32 %v481, %v509
    %v530 = vsub.f32 %v482, %v511
    %v531 = vsub.f32 %v483, %v513
    %v532 = vsub.f32 %v484, %v515
    %v533 = vsub.f32 %v485, %v517
    %v534 = vmul.f32 %v518, 1.442695
    %v535 = vpow.pop %v534
    %v536 = vmul.f32 %v519, 1.442695
    %v537 = vpow.pop %v536
    %v538 = vmul.f32 %v520, 1.442695
    %v539 = vpow.pop %v538
    %v540 = vmul.f32 %v521, 1.442695
    %v541 = vpow.pop %v540
    %v542 = vmul.f32 %v522, 1.442695
    %v543 = vpow.pop %v542
    %v544 = vmul.f32 %v523, 1.442695
    %v545 = vpow.pop %v544
    %v546 = vmul.f32 %v524, 1.442695
    %v547 = vpow.pop %v546
    %v548 = vmul.f32 %v525, 1.442695
    %v549 = vpow.pop %v548
    %v550 = vmul.f32 %v526, 1.442695
    %v551 = vpow.pop %v550
    %v552 = vmul.f32 %v527, 1.442695
    %v553 = vpow.pop %v552
    %v554 = vmul.f32 %v528, 1.442695
    %v555 = vpow.pop %v554
    %v556 = vmul.f32 %v529, 1.442695
    %v557 = vpow.pop %v556
    %v558 = vmul.f32 %v530, 1.442695
    %v559 = vpow.pop %v558
    %v560 = vmul.f32 %v531, 1.442695
    %v561 = vpow.pop %v560
    %v562 = vmul.f32 %v532, 1.442695
    %v563 = vpow.pop %v562
    %v564 = vmul.f32 %v533, 1.442695
    %v565 = vpow.pop %v564
    %566 = vadd.xlane.f32.xlu0 %v535
    %v567 = vpop.xlane.xlu0 %566
    %568 = vadd.xlane.f32.xlu0 %v537
    %v569 = vpop.xlane.xlu0 %568
    %570 = vadd.xlane.f32.xlu0 %v539
    %v571 = vpop.xlane.xlu0 %570
    %572 = vadd.xlane.f32.xlu0 %v541
    %v573 = vpop.xlane.xlu0 %572
    %574 = vadd.xlane.f32.xlu0 %v543
    %v575 = vpop.xlane.xlu0 %574
    %576 = vadd.xlane.f32.xlu0 %v545
    %v577 = vpop.xlane.xlu0 %576
    %578 = vadd.xlane.f32.xlu0 %v547
    %v579 = vpop.xlane.xlu0 %578
    %580 = vadd.xlane.f32.xlu0 %v549
    %v581 = vpop.xlane.xlu0 %580
    %582 = vadd.xlane.f32.xlu0 %v551
    %v583 = vpop.xlane.xlu0 %582
    %584 = vadd.xlane.f32.xlu0 %v553
    %v585 = vpop.xlane.xlu0 %584
    %586 = vadd.xlane.f32.xlu0 %v555
    %v587 = vpop.xlane.xlu0 %586
    %588 = vadd.xlane.f32.xlu0 %v557
    %v589 = vpop.xlane.xlu0 %588
    %590 = vadd.xlane.f32.xlu0 %v559
    %v591 = vpop.xlane.xlu0 %590
    %592 = vadd.xlane.f32.xlu0 %v561
    %v593 = vpop.xlane.xlu0 %592
    %594 = vadd.xlane.f32.xlu0 %v563
    %v595 = vpop.xlane.xlu0 %594
    %596 = vadd.xlane.f32.xlu0 %v565
    %v597 = vpop.xlane.xlu0 %596
    %v598 = vrcp.pop %v567
    %v599 = vrcp.pop %v569
    %v600 = vrcp.pop %v571
    %v601 = vrcp.pop %v573
    %v602 = vrcp.pop %v575
    %v603 = vrcp.pop %v577
    %v604 = vrcp.pop %v579
    %v605 = vrcp.pop %v581
    %v606 = vrcp.pop %v583
    %v607 = vrcp.pop %v585
    %v608 = vrcp.pop %v587
    %v609 = vrcp.pop %v589
    %v610 = vrcp.pop %v591
    %v611 = vrcp.pop %v593
    %v612 = vrcp.pop %v595
    %v613 = vrcp.pop %v597
    %v614 = vmul.f32 %v535, %v598
    %v615 = vmul.f32 %v537, %v599
    %v616 = vmul.f32 %v539, %v600
    %v617 = vmul.f32 %v541, %v601
    %v618 = vmul.f32 %v543, %v602
    %v619 = vmul.f32 %v545, %v603
    %v620 = vmul.f32 %v547, %v604
    %v621 = vmul.f32 %v549, %v605
    %v622 = vmul.f32 %v551, %v606
    %v623 = vmul.f32 %v553, %v607
    %v624 = vmul.f32 %v555, %v608
    %v625 = vmul.f32 %v557, %v609
    %v626 = vmul.f32 %v559, %v610
    %v627 = vmul.f32 %v561, %v611
    %v628 = vmul.f32 %v563, %v612
    %v629 = vmul.f32 %v565, %v613
    %630 = vmatpush.msra.mxu0 %v153
    %631 = vmatpush.msra.mxu0 %v150
    %632 = vmatpush.msra.mxu0 %v147
    %633 = vmatpush.msra.mxu0 %v144
    %634 = vmatpush.msra.mxu0 %v141
    %635 = vmatpush.msra.mxu0 %v138
    %636 = vmatpush.msra.mxu0 %v135
    %637 = vmatpush.msra.mxu0 %v132
    %638 = vmatpush.msra.mxu0 %v129
    %639 = vmatpush.msra.mxu0 %v126
    %640 = vmatpush.msra.mxu0 %v123
    %641 = vmatpush.msra.mxu0 %v120
    %642 = vmatpush.msra.mxu0 %v117
    %643 = vmatpush.msra.mxu0 %v114
    %644 = vmatpush.msra.mxu0 %v111
    %645 = vmatpush.msra.mxu0 %v108
    %646 = vmatmul.f32.gmra.mxu0 %v614
    %v647 = vpop.f32.mrf.mxu0
    %v648 = vadd.f32 0.0, %v647
    %649 = vmatmul.f32.gmra.mxu0 %v615
    %v650 = vpop.f32.mrf.mxu0
    %v651 = vadd.f32 0.0, %v650
    %652 = vmatmul.f32.gmra.mxu0 %v616
    %v653 = vpop.f32.mrf.mxu0
    %v654 = vadd.f32 0.0, %v653
    %655 = vmatmul.f32.gmra.mxu0 %v617
    %v656 = vpop.f32.mrf.mxu0
    %v657 = vadd.f32 0.0, %v656
    %658 = vmatmul.f32.gmra.mxu0 %v618
    %v659 = vpop.f32.mrf.mxu0
    %v660 = vadd.f32 0.0, %v659
    %661 = vmatmul.f32.gmra.mxu0 %v619
    %v662 = vpop.f32.mrf.mxu0
    %v663 = vadd.f32 0.0, %v662
    %664 = vmatmul.f32.gmra.mxu0 %v620
    %v665 = vpop.f32.mrf.mxu0
    %v666 = vadd.f32 0.0, %v665
    %667 = vmatmul.f32.gmra.mxu0 %v621
    %v668 = vpop.f32.mrf.mxu0
    %v669 = vadd.f32 0.0, %v668
    %670 = vmatmul.f32.gmra.mxu0 %v622
    %v671 = vpop.f32.mrf.mxu0
    %v672 = vadd.f32 0.0, %v671
    %673 = vmatmul.f32.gmra.mxu0 %v623
    %v674 = vpop.f32.mrf.mxu0
    %v675 = vadd.f32 0.0, %v674
    %676 = vmatmul.f32.gmra.mxu0 %v624
    %v677 = vpop.f32.mrf.mxu0
    %v678 = vadd.f32 0.0, %v677
    %679 = vmatmul.f32.gmra.mxu0 %v625
    %v680 = vpop.f32.mrf.mxu0
    %v681 = vadd.f32 0.0, %v680
    %682 = vmatmul.f32.gmra.mxu0 %v626
    %v683 = vpop.f32.mrf.mxu0
    %v684 = vadd.f32 0.0, %v683
    %685 = vmatmul.f32.gmra.mxu0 %v627
    %v686 = vpop.f32.mrf.mxu0
    %v687 = vadd.f32 0.0, %v686
    %688 = vmatmul.f32.gmra.mxu0 %v628
    %v689 = vpop.f32.mrf.mxu0
    %v690 = vadd.f32 0.0, %v689
    %691 = vmatmul.f32.gmra.mxu0 %v629
    %v692 = vpop.f32.mrf.mxu0
    %v693 = vadd.f32 0.0, %v692
    %694 = vdwg.mxu0
    %695 = vset.pattern.permute.xlu0 5
    %696 = vperm.xlu0 %695, %v230
    %v697 = vpop.permute.xlu0 %696
    %699 = vset.pattern.permute.xlu0 5
    %700 = vperm.xlu0 %699, %v233
    %v701 = vpop.permute.xlu0 %700
    %703 = vset.pattern.permute.xlu0 5
    %704 = vperm.xlu0 %703, %v236
    %v705 = vpop.permute.xlu0 %704
    %707 = vset.pattern.permute.xlu0 5
    %708 = vperm.xlu0 %707, %v239
    %v709 = vpop.permute.xlu0 %708
    %711 = vset.pattern.permute.xlu0 5
    %712 = vperm.xlu0 %711, %v242
    %v713 = vpop.permute.xlu0 %712
    %715 = vset.pattern.permute.xlu0 5
    %716 = vperm.xlu0 %715, %v245
    %v717 = vpop.permute.xlu0 %716
    %719 = vset.pattern.permute.xlu0 5
    %720 = vperm.xlu0 %719, %v248
    %v721 = vpop.permute.xlu0 %720
    %723 = vset.pattern.permute.xlu0 5
    %724 = vperm.xlu0 %723, %v251
    %v725 = vpop.permute.xlu0 %724
    %727 = vset.pattern.permute.xlu0 5
    %728 = vperm.xlu0 %727, %v254
    %v729 = vpop.permute.xlu0 %728
    %731 = vset.pattern.permute.xlu0 5
    %732 = vperm.xlu0 %731, %v257
    %v733 = vpop.permute.xlu0 %732
    %735 = vset.pattern.permute.xlu0 5
    %736 = vperm.xlu0 %735, %v260
    %v737 = vpop.permute.xlu0 %736
    %739 = vset.pattern.permute.xlu0 5
    %740 = vperm.xlu0 %739, %v263
    %v741 = vpop.permute.xlu0 %740
    %743 = vset.pattern.permute.xlu0 5
    %744 = vperm.xlu0 %743, %v266
    %v745 = vpop.permute.xlu0 %744
    %747 = vset.pattern.permute.xlu0 5
    %748 = vperm.xlu0 %747, %v269
    %v749 = vpop.permute.xlu0 %748
    %751 = vset.pattern.permute.xlu0 5
    %752 = vperm.xlu0 %751, %v272
    %v753 = vpop.permute.xlu0 %752
    %755 = vset.pattern.permute.xlu0 5
    %756 = vperm.xlu0 %755, %v275
    %v757 = vpop.permute.xlu0 %756
    %v759 = vperm.slane %v293, 1
    %v760 = vadd.f32 %v697, %v759
    %v761 = vadd.f32 %v701, %v759
    %v762 = vadd.f32 %v705, %v759
    %v763 = vadd.f32 %v709, %v759
    %v764 = vadd.f32 %v713, %v759
    %v765 = vadd.f32 %v717, %v759
    %v766 = vadd.f32 %v721, %v759
    %v767 = vadd.f32 %v725, %v759
    %v768 = vadd.f32 %v729, %v759
    %v769 = vadd.f32 %v733, %v759
    %v770 = vadd.f32 %v737, %v759
    %v771 = vadd.f32 %v741, %v759
    %v772 = vadd.f32 %v745, %v759
    %v773 = vadd.f32 %v749, %v759
    %v774 = vadd.f32 %v753, %v759
    %v775 = vadd.f32 %v757, %v759
    %vm776 = vcmp.ge.f32.partialorder %v760, 0.0
    %vm777 = vcmp.ge.f32.partialorder %v761, 0.0
    %vm778 = vcmp.ge.f32.partialorder %v762, 0.0
    %vm779 = vcmp.ge.f32.partialorder %v763, 0.0
    %vm780 = vcmp.ge.f32.partialorder %v764, 0.0
    %vm781 = vcmp.ge.f32.partialorder %v765, 0.0
    %vm782 = vcmp.ge.f32.partialorder %v766, 0.0
    %vm783 = vcmp.ge.f32.partialorder %v767, 0.0
    %vm784 = vcmp.ge.f32.partialorder %v768, 0.0
    %vm785 = vcmp.ge.f32.partialorder %v769, 0.0
    %vm786 = vcmp.ge.f32.partialorder %v770, 0.0
    %vm787 = vcmp.ge.f32.partialorder %v771, 0.0
    %vm788 = vcmp.ge.f32.partialorder %v772, 0.0
    %vm789 = vcmp.ge.f32.partialorder %v773, 0.0
    %vm790 = vcmp.ge.f32.partialorder %v774, 0.0
    %vm791 = vcmp.ge.f32.partialorder %v775, 0.0
    %v792 = vmul.f32 %v760, 0.2
    %v793 = vmul.f32 %v761, 0.2
    %v794 = vmul.f32 %v762, 0.2
    %v795 = vmul.f32 %v763, 0.2
    %v796 = vmul.f32 %v764, 0.2
    %v797 = vmul.f32 %v765, 0.2
    %v798 = vmul.f32 %v766, 0.2
    %v799 = vmul.f32 %v767, 0.2
    %v800 = vmul.f32 %v768, 0.2
    %v801 = vmul.f32 %v769, 0.2
    %v802 = vmul.f32 %v770, 0.2
    %v803 = vmul.f32 %v771, 0.2
    %v804 = vmul.f32 %v772, 0.2
    %v805 = vmul.f32 %v773, 0.2
    %v806 = vmul.f32 %v774, 0.2
    %v807 = vmul.f32 %v775, 0.2
    %v808 = vsel %vm776, %v760, %v792
    %v809 = vsel %vm777, %v761, %v793
    %v810 = vsel %vm778, %v762, %v794
    %v811 = vsel %vm779, %v763, %v795
    %v812 = vsel %vm780, %v764, %v796
    %v813 = vsel %vm781, %v765, %v797
    %v814 = vsel %vm782, %v766, %v798
    %v815 = vsel %vm783, %v767, %v799
    %v816 = vsel %vm784, %v768, %v800
    %v817 = vsel %vm785, %v769, %v801
    %v818 = vsel %vm786, %v770, %v802
    %v819 = vsel %vm787, %v771, %v803
    %v820 = vsel %vm788, %v772, %v804
    %v821 = vsel %vm789, %v773, %v805
    %v822 = vsel %vm790, %v774, %v806
    %v823 = vsel %vm791, %v775, %v807
    %v824 = vadd.f32 %v808, %v309
    %v825 = vadd.f32 %v809, %v310
    %v826 = vadd.f32 %v810, %v311
    %v827 = vadd.f32 %v811, %v312
    %v828 = vadd.f32 %v812, %v313
    %v829 = vadd.f32 %v813, %v314
    %v830 = vadd.f32 %v814, %v315
    %v831 = vadd.f32 %v815, %v316
    %v832 = vadd.f32 %v816, %v317
    %v833 = vadd.f32 %v817, %v318
    %v834 = vadd.f32 %v818, %v319
    %v835 = vadd.f32 %v819, %v320
    %v836 = vadd.f32 %v820, %v321
    %v837 = vadd.f32 %v821, %v322
    %v838 = vadd.f32 %v822, %v323
    %v839 = vadd.f32 %v823, %v324
    %840 = vmax.xlane.f32.xlu0 %v824
    %v841 = vpop.xlane.xlu0 %840
    %842 = vmax.xlane.f32.xlu0 %v825
    %v843 = vpop.xlane.xlu0 %842
    %844 = vmax.xlane.f32.xlu0 %v826
    %v845 = vpop.xlane.xlu0 %844
    %846 = vmax.xlane.f32.xlu0 %v827
    %v847 = vpop.xlane.xlu0 %846
    %848 = vmax.xlane.f32.xlu0 %v828
    %v849 = vpop.xlane.xlu0 %848
    %850 = vmax.xlane.f32.xlu0 %v829
    %v851 = vpop.xlane.xlu0 %850
    %852 = vmax.xlane.f32.xlu0 %v830
    %v853 = vpop.xlane.xlu0 %852
    %854 = vmax.xlane.f32.xlu0 %v831
    %v855 = vpop.xlane.xlu0 %854
    %856 = vmax.xlane.f32.xlu0 %v832
    %v857 = vpop.xlane.xlu0 %856
    %858 = vmax.xlane.f32.xlu0 %v833
    %v859 = vpop.xlane.xlu0 %858
    %860 = vmax.xlane.f32.xlu0 %v834
    %v861 = vpop.xlane.xlu0 %860
    %862 = vmax.xlane.f32.xlu0 %v835
    %v863 = vpop.xlane.xlu0 %862
    %864 = vmax.xlane.f32.xlu0 %v836
    %v865 = vpop.xlane.xlu0 %864
    %866 = vmax.xlane.f32.xlu0 %v837
    %v867 = vpop.xlane.xlu0 %866
    %868 = vmax.xlane.f32.xlu0 %v838
    %v869 = vpop.xlane.xlu0 %868
    %870 = vmax.xlane.f32.xlu0 %v839
    %v871 = vpop.xlane.xlu0 %870
    %v872 = vsub.f32 %v824, %v841
    %v873 = vsub.f32 %v825, %v843
    %v874 = vsub.f32 %v826, %v845
    %v875 = vsub.f32 %v827, %v847
    %v876 = vsub.f32 %v828, %v849
    %v877 = vsub.f32 %v829, %v851
    %v878 = vsub.f32 %v830, %v853
    %v879 = vsub.f32 %v831, %v855
    %v880 = vsub.f32 %v832, %v857
    %v881 = vsub.f32 %v833, %v859
    %v882 = vsub.f32 %v834, %v861
    %v883 = vsub.f32 %v835, %v863
    %v884 = vsub.f32 %v836, %v865
    %v885 = vsub.f32 %v837, %v867
    %v886 = vsub.f32 %v838, %v869
    %v887 = vsub.f32 %v839, %v871
    %v888 = vmul.f32 %v872, 1.442695
    %v889 = vpow.pop %v888
    %v890 = vmul.f32 %v873, 1.442695
    %v891 = vpow.pop %v890
    %v892 = vmul.f32 %v874, 1.442695
    %v893 = vpow.pop %v892
    %v894 = vmul.f32 %v875, 1.442695
    %v895 = vpow.pop %v894
    %v896 = vmul.f32 %v876, 1.442695
    %v897 = vpow.pop %v896
    %v898 = vmul.f32 %v877, 1.442695
    %v899 = vpow.pop %v898
    %v900 = vmul.f32 %v878, 1.442695
    %v901 = vpow.pop %v900
    %v902 = vmul.f32 %v879, 1.442695
    %v903 = vpow.pop %v902
    %v904 = vmul.f32 %v880, 1.442695
    %v905 = vpow.pop %v904
    %v906 = vmul.f32 %v881, 1.442695
    %v907 = vpow.pop %v906
    %v908 = vmul.f32 %v882, 1.442695
    %v909 = vpow.pop %v908
    %v910 = vmul.f32 %v883, 1.442695
    %v911 = vpow.pop %v910
    %v912 = vmul.f32 %v884, 1.442695
    %v913 = vpow.pop %v912
    %v914 = vmul.f32 %v885, 1.442695
    %v915 = vpow.pop %v914
    %v916 = vmul.f32 %v886, 1.442695
    %v917 = vpow.pop %v916
    %v918 = vmul.f32 %v887, 1.442695
    %v919 = vpow.pop %v918
    %920 = vadd.xlane.f32.xlu0 %v889
    %v921 = vpop.xlane.xlu0 %920
    %922 = vadd.xlane.f32.xlu0 %v891
    %v923 = vpop.xlane.xlu0 %922
    %924 = vadd.xlane.f32.xlu0 %v893
    %v925 = vpop.xlane.xlu0 %924
    %926 = vadd.xlane.f32.xlu0 %v895
    %v927 = vpop.xlane.xlu0 %926
    %928 = vadd.xlane.f32.xlu0 %v897
    %v929 = vpop.xlane.xlu0 %928
    %930 = vadd.xlane.f32.xlu0 %v899
    %v931 = vpop.xlane.xlu0 %930
    %932 = vadd.xlane.f32.xlu0 %v901
    %v933 = vpop.xlane.xlu0 %932
    %934 = vadd.xlane.f32.xlu0 %v903
    %v935 = vpop.xlane.xlu0 %934
    %936 = vadd.xlane.f32.xlu0 %v905
    %v937 = vpop.xlane.xlu0 %936
    %938 = vadd.xlane.f32.xlu0 %v907
    %v939 = vpop.xlane.xlu0 %938
    %940 = vadd.xlane.f32.xlu0 %v909
    %v941 = vpop.xlane.xlu0 %940
    %942 = vadd.xlane.f32.xlu0 %v911
    %v943 = vpop.xlane.xlu0 %942
    %944 = vadd.xlane.f32.xlu0 %v913
    %v945 = vpop.xlane.xlu0 %944
    %946 = vadd.xlane.f32.xlu0 %v915
    %v947 = vpop.xlane.xlu0 %946
    %948 = vadd.xlane.f32.xlu0 %v917
    %v949 = vpop.xlane.xlu0 %948
    %950 = vadd.xlane.f32.xlu0 %v919
    %v951 = vpop.xlane.xlu0 %950
    %v952 = vrcp.pop %v921
    %v953 = vrcp.pop %v923
    %v954 = vrcp.pop %v925
    %v955 = vrcp.pop %v927
    %v956 = vrcp.pop %v929
    %v957 = vrcp.pop %v931
    %v958 = vrcp.pop %v933
    %v959 = vrcp.pop %v935
    %v960 = vrcp.pop %v937
    %v961 = vrcp.pop %v939
    %v962 = vrcp.pop %v941
    %v963 = vrcp.pop %v943
    %v964 = vrcp.pop %v945
    %v965 = vrcp.pop %v947
    %v966 = vrcp.pop %v949
    %v967 = vrcp.pop %v951
    %v968 = vmul.f32 %v889, %v952
    %v969 = vmul.f32 %v891, %v953
    %v970 = vmul.f32 %v893, %v954
    %v971 = vmul.f32 %v895, %v955
    %v972 = vmul.f32 %v897, %v956
    %v973 = vmul.f32 %v899, %v957
    %v974 = vmul.f32 %v901, %v958
    %v975 = vmul.f32 %v903, %v959
    %v976 = vmul.f32 %v905, %v960
    %v977 = vmul.f32 %v907, %v961
    %v978 = vmul.f32 %v909, %v962
    %v979 = vmul.f32 %v911, %v963
    %v980 = vmul.f32 %v913, %v964
    %v981 = vmul.f32 %v915, %v965
    %v982 = vmul.f32 %v917, %v966
    %v983 = vmul.f32 %v919, %v967
    %984 = vrot.lane.b32.xlu0 %v108, 112
    %v985 = vpop.permute.xlu0 %984
    %986 = vrot.lane.b32.xlu0 %v111, 112
    %v987 = vpop.permute.xlu0 %986
    %988 = vrot.lane.b32.xlu0 %v114, 112
    %v989 = vpop.permute.xlu0 %988
    %990 = vrot.lane.b32.xlu0 %v117, 112
    %v991 = vpop.permute.xlu0 %990
    %992 = vrot.lane.b32.xlu0 %v120, 112
    %v993 = vpop.permute.xlu0 %992
    %994 = vrot.lane.b32.xlu0 %v123, 112
    %v995 = vpop.permute.xlu0 %994
    %996 = vrot.lane.b32.xlu0 %v126, 112
    %v997 = vpop.permute.xlu0 %996
    %998 = vrot.lane.b32.xlu0 %v129, 112
    %v999 = vpop.permute.xlu0 %998
    %1000 = vrot.lane.b32.xlu0 %v132, 112
    %v1001 = vpop.permute.xlu0 %1000
    %1002 = vrot.lane.b32.xlu0 %v135, 112
    %v1003 = vpop.permute.xlu0 %1002
    %1004 = vrot.lane.b32.xlu0 %v138, 112
    %v1005 = vpop.permute.xlu0 %1004
    %1006 = vrot.lane.b32.xlu0 %v141, 112
    %v1007 = vpop.permute.xlu0 %1006
    %1008 = vrot.lane.b32.xlu0 %v144, 112
    %v1009 = vpop.permute.xlu0 %1008
    %1010 = vrot.lane.b32.xlu0 %v147, 112
    %v1011 = vpop.permute.xlu0 %1010
    %1012 = vrot.lane.b32.xlu0 %v150, 112
    %v1013 = vpop.permute.xlu0 %1012
    %1014 = vrot.lane.b32.xlu0 %v153, 112
    %v1015 = vpop.permute.xlu0 %1014
    %1032 = vmatpush.msra.mxu0 %v1015
    %1033 = vmatpush.msra.mxu0 %v1013
    %1034 = vmatpush.msra.mxu0 %v1011
    %1035 = vmatpush.msra.mxu0 %v1009
    %1036 = vmatpush.msra.mxu0 %v1007
    %1037 = vmatpush.msra.mxu0 %v1005
    %1038 = vmatpush.msra.mxu0 %v1003
    %1039 = vmatpush.msra.mxu0 %v1001
    %1040 = vmatpush.msra.mxu0 %v999
    %1041 = vmatpush.msra.mxu0 %v997
    %1042 = vmatpush.msra.mxu0 %v995
    %1043 = vmatpush.msra.mxu0 %v993
    %1044 = vmatpush.msra.mxu0 %v991
    %1045 = vmatpush.msra.mxu0 %v989
    %1046 = vmatpush.msra.mxu0 %v987
    %1047 = vmatpush.msra.mxu0 %v985
    %1048 = vmatmul.f32.gmra.mxu0 %v968
    %v1049 = vpop.f32.mrf.mxu0
    %v1050 = vadd.f32 0.0, %v1049
    %1051 = vmatmul.f32.gmra.mxu0 %v969
    %v1052 = vpop.f32.mrf.mxu0
    %v1053 = vadd.f32 0.0, %v1052
    %1054 = vmatmul.f32.gmra.mxu0 %v970
    %v1055 = vpop.f32.mrf.mxu0
    %v1056 = vadd.f32 0.0, %v1055
    %1057 = vmatmul.f32.gmra.mxu0 %v971
    %v1058 = vpop.f32.mrf.mxu0
    %v1059 = vadd.f32 0.0, %v1058
    %1060 = vmatmul.f32.gmra.mxu0 %v972
    %v1061 = vpop.f32.mrf.mxu0
    %v1062 = vadd.f32 0.0, %v1061
    %1063 = vmatmul.f32.gmra.mxu0 %v973
    %v1064 = vpop.f32.mrf.mxu0
    %v1065 = vadd.f32 0.0, %v1064
    %1066 = vmatmul.f32.gmra.mxu0 %v974
    %v1067 = vpop.f32.mrf.mxu0
    %v1068 = vadd.f32 0.0, %v1067
    %1069 = vmatmul.f32.gmra.mxu0 %v975
    %v1070 = vpop.f32.mrf.mxu0
    %v1071 = vadd.f32 0.0, %v1070
    %1072 = vmatmul.f32.gmra.mxu0 %v976
    %v1073 = vpop.f32.mrf.mxu0
    %v1074 = vadd.f32 0.0, %v1073
    %1075 = vmatmul.f32.gmra.mxu0 %v977
    %v1076 = vpop.f32.mrf.mxu0
    %v1077 = vadd.f32 0.0, %v1076
    %1078 = vmatmul.f32.gmra.mxu0 %v978
    %v1079 = vpop.f32.mrf.mxu0
    %v1080 = vadd.f32 0.0, %v1079
    %1081 = vmatmul.f32.gmra.mxu0 %v979
    %v1082 = vpop.f32.mrf.mxu0
    %v1083 = vadd.f32 0.0, %v1082
    %1084 = vmatmul.f32.gmra.mxu0 %v980
    %v1085 = vpop.f32.mrf.mxu0
    %v1086 = vadd.f32 0.0, %v1085
    %1087 = vmatmul.f32.gmra.mxu0 %v981
    %v1088 = vpop.f32.mrf.mxu0
    %v1089 = vadd.f32 0.0, %v1088
    %1090 = vmatmul.f32.gmra.mxu0 %v982
    %v1091 = vpop.f32.mrf.mxu0
    %v1092 = vadd.f32 0.0, %v1091
    %1093 = vmatmul.f32.gmra.mxu0 %v983
    %v1094 = vpop.f32.mrf.mxu0
    %v1095 = vadd.f32 0.0, %v1094
    %1096 = vdwg.mxu0
    %1097 = vset.pattern.permute.xlu0 6
    %1098 = vperm.xlu0 %1097, %v230
    %v1099 = vpop.permute.xlu0 %1098
    %1101 = vset.pattern.permute.xlu0 6
    %1102 = vperm.xlu0 %1101, %v233
    %v1103 = vpop.permute.xlu0 %1102
    %1105 = vset.pattern.permute.xlu0 6
    %1106 = vperm.xlu0 %1105, %v236
    %v1107 = vpop.permute.xlu0 %1106
    %1109 = vset.pattern.permute.xlu0 6
    %1110 = vperm.xlu0 %1109, %v239
    %v1111 = vpop.permute.xlu0 %1110
    %1113 = vset.pattern.permute.xlu0 6
    %1114 = vperm.xlu0 %1113, %v242
    %v1115 = vpop.permute.xlu0 %1114
    %1117 = vset.pattern.permute.xlu0 6
    %1118 = vperm.xlu0 %1117, %v245
    %v1119 = vpop.permute.xlu0 %1118
    %1121 = vset.pattern.permute.xlu0 6
    %1122 = vperm.xlu0 %1121, %v248
    %v1123 = vpop.permute.xlu0 %1122
    %1125 = vset.pattern.permute.xlu0 6
    %1126 = vperm.xlu0 %1125, %v251
    %v1127 = vpop.permute.xlu0 %1126
    %1129 = vset.pattern.permute.xlu0 6
    %1130 = vperm.xlu0 %1129, %v254
    %v1131 = vpop.permute.xlu0 %1130
    %1133 = vset.pattern.permute.xlu0 6
    %1134 = vperm.xlu0 %1133, %v257
    %v1135 = vpop.permute.xlu0 %1134
    %1137 = vset.pattern.permute.xlu0 6
    %1138 = vperm.xlu0 %1137, %v260
    %v1139 = vpop.permute.xlu0 %1138
    %1141 = vset.pattern.permute.xlu0 6
    %1142 = vperm.xlu0 %1141, %v263
    %v1143 = vpop.permute.xlu0 %1142
    %1145 = vset.pattern.permute.xlu0 6
    %1146 = vperm.xlu0 %1145, %v266
    %v1147 = vpop.permute.xlu0 %1146
    %1149 = vset.pattern.permute.xlu0 6
    %1150 = vperm.xlu0 %1149, %v269
    %v1151 = vpop.permute.xlu0 %1150
    %1153 = vset.pattern.permute.xlu0 6
    %1154 = vperm.xlu0 %1153, %v272
    %v1155 = vpop.permute.xlu0 %1154
    %1157 = vset.pattern.permute.xlu0 6
    %1158 = vperm.xlu0 %1157, %v275
    %v1159 = vpop.permute.xlu0 %1158
    %v1161 = vperm.slane %v293, 2
    %v1162 = vadd.f32 %v1099, %v1161
    %v1163 = vadd.f32 %v1103, %v1161
    %v1164 = vadd.f32 %v1107, %v1161
    %v1165 = vadd.f32 %v1111, %v1161
    %v1166 = vadd.f32 %v1115, %v1161
    %v1167 = vadd.f32 %v1119, %v1161
    %v1168 = vadd.f32 %v1123, %v1161
    %v1169 = vadd.f32 %v1127, %v1161
    %v1170 = vadd.f32 %v1131, %v1161
    %v1171 = vadd.f32 %v1135, %v1161
    %v1172 = vadd.f32 %v1139, %v1161
    %v1173 = vadd.f32 %v1143, %v1161
    %v1174 = vadd.f32 %v1147, %v1161
    %v1175 = vadd.f32 %v1151, %v1161
    %v1176 = vadd.f32 %v1155, %v1161
    %v1177 = vadd.f32 %v1159, %v1161
    %vm1178 = vcmp.ge.f32.partialorder %v1162, 0.0
    %vm1179 = vcmp.ge.f32.partialorder %v1163, 0.0
    %vm1180 = vcmp.ge.f32.partialorder %v1164, 0.0
    %vm1181 = vcmp.ge.f32.partialorder %v1165, 0.0
    %vm1182 = vcmp.ge.f32.partialorder %v1166, 0.0
    %vm1183 = vcmp.ge.f32.partialorder %v1167, 0.0
    %vm1184 = vcmp.ge.f32.partialorder %v1168, 0.0
    %vm1185 = vcmp.ge.f32.partialorder %v1169, 0.0
    %vm1186 = vcmp.ge.f32.partialorder %v1170, 0.0
    %vm1187 = vcmp.ge.f32.partialorder %v1171, 0.0
    %vm1188 = vcmp.ge.f32.partialorder %v1172, 0.0
    %vm1189 = vcmp.ge.f32.partialorder %v1173, 0.0
    %vm1190 = vcmp.ge.f32.partialorder %v1174, 0.0
    %vm1191 = vcmp.ge.f32.partialorder %v1175, 0.0
    %vm1192 = vcmp.ge.f32.partialorder %v1176, 0.0
    %vm1193 = vcmp.ge.f32.partialorder %v1177, 0.0
    %v1194 = vmul.f32 %v1162, 0.2
    %v1195 = vmul.f32 %v1163, 0.2
    %v1196 = vmul.f32 %v1164, 0.2
    %v1197 = vmul.f32 %v1165, 0.2
    %v1198 = vmul.f32 %v1166, 0.2
    %v1199 = vmul.f32 %v1167, 0.2
    %v1200 = vmul.f32 %v1168, 0.2
    %v1201 = vmul.f32 %v1169, 0.2
    %v1202 = vmul.f32 %v1170, 0.2
    %v1203 = vmul.f32 %v1171, 0.2
    %v1204 = vmul.f32 %v1172, 0.2
    %v1205 = vmul.f32 %v1173, 0.2
    %v1206 = vmul.f32 %v1174, 0.2
    %v1207 = vmul.f32 %v1175, 0.2
    %v1208 = vmul.f32 %v1176, 0.2
    %v1209 = vmul.f32 %v1177, 0.2
    %v1210 = vsel %vm1178, %v1162, %v1194
    %v1211 = vsel %vm1179, %v1163, %v1195
    %v1212 = vsel %vm1180, %v1164, %v1196
    %v1213 = vsel %vm1181, %v1165, %v1197
    %v1214 = vsel %vm1182, %v1166, %v1198
    %v1215 = vsel %vm1183, %v1167, %v1199
    %v1216 = vsel %vm1184, %v1168, %v1200
    %v1217 = vsel %vm1185, %v1169, %v1201
    %v1218 = vsel %vm1186, %v1170, %v1202
    %v1219 = vsel %vm1187, %v1171, %v1203
    %v1220 = vsel %vm1188, %v1172, %v1204
    %v1221 = vsel %vm1189, %v1173, %v1205
    %v1222 = vsel %vm1190, %v1174, %v1206
    %v1223 = vsel %vm1191, %v1175, %v1207
    %v1224 = vsel %vm1192, %v1176, %v1208
    %v1225 = vsel %vm1193, %v1177, %v1209
    %v1226 = vadd.f32 %v1210, %v309
    %v1227 = vadd.f32 %v1211, %v310
    %v1228 = vadd.f32 %v1212, %v311
    %v1229 = vadd.f32 %v1213, %v312
    %v1230 = vadd.f32 %v1214, %v313
    %v1231 = vadd.f32 %v1215, %v314
    %v1232 = vadd.f32 %v1216, %v315
    %v1233 = vadd.f32 %v1217, %v316
    %v1234 = vadd.f32 %v1218, %v317
    %v1235 = vadd.f32 %v1219, %v318
    %v1236 = vadd.f32 %v1220, %v319
    %v1237 = vadd.f32 %v1221, %v320
    %v1238 = vadd.f32 %v1222, %v321
    %v1239 = vadd.f32 %v1223, %v322
    %v1240 = vadd.f32 %v1224, %v323
    %v1241 = vadd.f32 %v1225, %v324
    %1242 = vmax.xlane.f32.xlu0 %v1226
    %v1243 = vpop.xlane.xlu0 %1242
    %1244 = vmax.xlane.f32.xlu0 %v1227
    %v1245 = vpop.xlane.xlu0 %1244
    %1246 = vmax.xlane.f32.xlu0 %v1228
    %v1247 = vpop.xlane.xlu0 %1246
    %1248 = vmax.xlane.f32.xlu0 %v1229
    %v1249 = vpop.xlane.xlu0 %1248
    %1250 = vmax.xlane.f32.xlu0 %v1230
    %v1251 = vpop.xlane.xlu0 %1250
    %1252 = vmax.xlane.f32.xlu0 %v1231
    %v1253 = vpop.xlane.xlu0 %1252
    %1254 = vmax.xlane.f32.xlu0 %v1232
    %v1255 = vpop.xlane.xlu0 %1254
    %1256 = vmax.xlane.f32.xlu0 %v1233
    %v1257 = vpop.xlane.xlu0 %1256
    %1258 = vmax.xlane.f32.xlu0 %v1234
    %v1259 = vpop.xlane.xlu0 %1258
    %1260 = vmax.xlane.f32.xlu0 %v1235
    %v1261 = vpop.xlane.xlu0 %1260
    %1262 = vmax.xlane.f32.xlu0 %v1236
    %v1263 = vpop.xlane.xlu0 %1262
    %1264 = vmax.xlane.f32.xlu0 %v1237
    %v1265 = vpop.xlane.xlu0 %1264
    %1266 = vmax.xlane.f32.xlu0 %v1238
    %v1267 = vpop.xlane.xlu0 %1266
    %1268 = vmax.xlane.f32.xlu0 %v1239
    %v1269 = vpop.xlane.xlu0 %1268
    %1270 = vmax.xlane.f32.xlu0 %v1240
    %v1271 = vpop.xlane.xlu0 %1270
    %1272 = vmax.xlane.f32.xlu0 %v1241
    %v1273 = vpop.xlane.xlu0 %1272
    %v1274 = vsub.f32 %v1226, %v1243
    %v1275 = vsub.f32 %v1227, %v1245
    %v1276 = vsub.f32 %v1228, %v1247
    %v1277 = vsub.f32 %v1229, %v1249
    %v1278 = vsub.f32 %v1230, %v1251
    %v1279 = vsub.f32 %v1231, %v1253
    %v1280 = vsub.f32 %v1232, %v1255
    %v1281 = vsub.f32 %v1233, %v1257
    %v1282 = vsub.f32 %v1234, %v1259
    %v1283 = vsub.f32 %v1235, %v1261
    %v1284 = vsub.f32 %v1236, %v1263
    %v1285 = vsub.f32 %v1237, %v1265
    %v1286 = vsub.f32 %v1238, %v1267
    %v1287 = vsub.f32 %v1239, %v1269
    %v1288 = vsub.f32 %v1240, %v1271
    %v1289 = vsub.f32 %v1241, %v1273
    %v1290 = vmul.f32 %v1274, 1.442695
    %v1291 = vpow.pop %v1290
    %v1292 = vmul.f32 %v1275, 1.442695
    %v1293 = vpow.pop %v1292
    %v1294 = vmul.f32 %v1276, 1.442695
    %v1295 = vpow.pop %v1294
    %v1296 = vmul.f32 %v1277, 1.442695
    %v1297 = vpow.pop %v1296
    %v1298 = vmul.f32 %v1278, 1.442695
    %v1299 = vpow.pop %v1298
    %v1300 = vmul.f32 %v1279, 1.442695
    %v1301 = vpow.pop %v1300
    %v1302 = vmul.f32 %v1280, 1.442695
    %v1303 = vpow.pop %v1302
    %v1304 = vmul.f32 %v1281, 1.442695
    %v1305 = vpow.pop %v1304
    %v1306 = vmul.f32 %v1282, 1.442695
    %v1307 = vpow.pop %v1306
    %v1308 = vmul.f32 %v1283, 1.442695
    %v1309 = vpow.pop %v1308
    %v1310 = vmul.f32 %v1284, 1.442695
    %v1311 = vpow.pop %v1310
    %v1312 = vmul.f32 %v1285, 1.442695
    %v1313 = vpow.pop %v1312
    %v1314 = vmul.f32 %v1286, 1.442695
    %v1315 = vpow.pop %v1314
    %v1316 = vmul.f32 %v1287, 1.442695
    %v1317 = vpow.pop %v1316
    %v1318 = vmul.f32 %v1288, 1.442695
    %v1319 = vpow.pop %v1318
    %v1320 = vmul.f32 %v1289, 1.442695
    %v1321 = vpow.pop %v1320
    %1322 = vadd.xlane.f32.xlu0 %v1291
    %v1323 = vpop.xlane.xlu0 %1322
    %1324 = vadd.xlane.f32.xlu0 %v1293
    %v1325 = vpop.xlane.xlu0 %1324
    %1326 = vadd.xlane.f32.xlu0 %v1295
    %v1327 = vpop.xlane.xlu0 %1326
    %1328 = vadd.xlane.f32.xlu0 %v1297
    %v1329 = vpop.xlane.xlu0 %1328
    %1330 = vadd.xlane.f32.xlu0 %v1299
    %v1331 = vpop.xlane.xlu0 %1330
    %1332 = vadd.xlane.f32.xlu0 %v1301
    %v1333 = vpop.xlane.xlu0 %1332
    %1334 = vadd.xlane.f32.xlu0 %v1303
    %v1335 = vpop.xlane.xlu0 %1334
    %1336 = vadd.xlane.f32.xlu0 %v1305
    %v1337 = vpop.xlane.xlu0 %1336
    %1338 = vadd.xlane.f32.xlu0 %v1307
    %v1339 = vpop.xlane.xlu0 %1338
    %1340 = vadd.xlane.f32.xlu0 %v1309
    %v1341 = vpop.xlane.xlu0 %1340
    %1342 = vadd.xlane.f32.xlu0 %v1311
    %v1343 = vpop.xlane.xlu0 %1342
    %1344 = vadd.xlane.f32.xlu0 %v1313
    %v1345 = vpop.xlane.xlu0 %1344
    %1346 = vadd.xlane.f32.xlu0 %v1315
    %v1347 = vpop.xlane.xlu0 %1346
    %1348 = vadd.xlane.f32.xlu0 %v1317
    %v1349 = vpop.xlane.xlu0 %1348
    %1350 = vadd.xlane.f32.xlu0 %v1319
    %v1351 = vpop.xlane.xlu0 %1350
    %1352 = vadd.xlane.f32.xlu0 %v1321
    %v1353 = vpop.xlane.xlu0 %1352
    %v1354 = vrcp.pop %v1323
    %v1355 = vrcp.pop %v1325
    %v1356 = vrcp.pop %v1327
    %v1357 = vrcp.pop %v1329
    %v1358 = vrcp.pop %v1331
    %v1359 = vrcp.pop %v1333
    %v1360 = vrcp.pop %v1335
    %v1361 = vrcp.pop %v1337
    %v1362 = vrcp.pop %v1339
    %v1363 = vrcp.pop %v1341
    %v1364 = vrcp.pop %v1343
    %v1365 = vrcp.pop %v1345
    %v1366 = vrcp.pop %v1347
    %v1367 = vrcp.pop %v1349
    %v1368 = vrcp.pop %v1351
    %v1369 = vrcp.pop %v1353
    %v1370 = vmul.f32 %v1291, %v1354
    %v1371 = vmul.f32 %v1293, %v1355
    %v1372 = vmul.f32 %v1295, %v1356
    %v1373 = vmul.f32 %v1297, %v1357
    %v1374 = vmul.f32 %v1299, %v1358
    %v1375 = vmul.f32 %v1301, %v1359
    %v1376 = vmul.f32 %v1303, %v1360
    %v1377 = vmul.f32 %v1305, %v1361
    %v1378 = vmul.f32 %v1307, %v1362
    %v1379 = vmul.f32 %v1309, %v1363
    %v1380 = vmul.f32 %v1311, %v1364
    %v1381 = vmul.f32 %v1313, %v1365
    %v1382 = vmul.f32 %v1315, %v1366
    %v1383 = vmul.f32 %v1317, %v1367
    %v1384 = vmul.f32 %v1319, %v1368
    %v1385 = vmul.f32 %v1321, %v1369
    %1386 = vrot.lane.b32.xlu0 %v108, 96
    %v1387 = vpop.permute.xlu0 %1386
    %1388 = vrot.lane.b32.xlu0 %v111, 96
    %v1389 = vpop.permute.xlu0 %1388
    %1390 = vrot.lane.b32.xlu0 %v114, 96
    %v1391 = vpop.permute.xlu0 %1390
    %1392 = vrot.lane.b32.xlu0 %v117, 96
    %v1393 = vpop.permute.xlu0 %1392
    %1394 = vrot.lane.b32.xlu0 %v120, 96
    %v1395 = vpop.permute.xlu0 %1394
    %1396 = vrot.lane.b32.xlu0 %v123, 96
    %v1397 = vpop.permute.xlu0 %1396
    %1398 = vrot.lane.b32.xlu0 %v126, 96
    %v1399 = vpop.permute.xlu0 %1398
    %1400 = vrot.lane.b32.xlu0 %v129, 96
    %v1401 = vpop.permute.xlu0 %1400
    %1402 = vrot.lane.b32.xlu0 %v132, 96
    %v1403 = vpop.permute.xlu0 %1402
    %1404 = vrot.lane.b32.xlu0 %v135, 96
    %v1405 = vpop.permute.xlu0 %1404
    %1406 = vrot.lane.b32.xlu0 %v138, 96
    %v1407 = vpop.permute.xlu0 %1406
    %1408 = vrot.lane.b32.xlu0 %v141, 96
    %v1409 = vpop.permute.xlu0 %1408
    %1410 = vrot.lane.b32.xlu0 %v144, 96
    %v1411 = vpop.permute.xlu0 %1410
    %1412 = vrot.lane.b32.xlu0 %v147, 96
    %v1413 = vpop.permute.xlu0 %1412
    %1414 = vrot.lane.b32.xlu0 %v150, 96
    %v1415 = vpop.permute.xlu0 %1414
    %1416 = vrot.lane.b32.xlu0 %v153, 96
    %v1417 = vpop.permute.xlu0 %1416
    %1434 = vmatpush.msra.mxu0 %v1417
    %1435 = vmatpush.msra.mxu0 %v1415
    %1436 = vmatpush.msra.mxu0 %v1413
    %1437 = vmatpush.msra.mxu0 %v1411
    %1438 = vmatpush.msra.mxu0 %v1409
    %1439 = vmatpush.msra.mxu0 %v1407
    %1440 = vmatpush.msra.mxu0 %v1405
    %1441 = vmatpush.msra.mxu0 %v1403
    %1442 = vmatpush.msra.mxu0 %v1401
    %1443 = vmatpush.msra.mxu0 %v1399
    %1444 = vmatpush.msra.mxu0 %v1397
    %1445 = vmatpush.msra.mxu0 %v1395
    %1446 = vmatpush.msra.mxu0 %v1393
    %1447 = vmatpush.msra.mxu0 %v1391
    %1448 = vmatpush.msra.mxu0 %v1389
    %1449 = vmatpush.msra.mxu0 %v1387
    %1450 = vmatmul.f32.gmra.mxu0 %v1370
    %v1451 = vpop.f32.mrf.mxu0
    %v1452 = vadd.f32 0.0, %v1451
    %1453 = vmatmul.f32.gmra.mxu0 %v1371
    %v1454 = vpop.f32.mrf.mxu0
    %v1455 = vadd.f32 0.0, %v1454
    %1456 = vmatmul.f32.gmra.mxu0 %v1372
    %v1457 = vpop.f32.mrf.mxu0
    %v1458 = vadd.f32 0.0, %v1457
    %1459 = vmatmul.f32.gmra.mxu0 %v1373
    %v1460 = vpop.f32.mrf.mxu0
    %v1461 = vadd.f32 0.0, %v1460
    %1462 = vmatmul.f32.gmra.mxu0 %v1374
    %v1463 = vpop.f32.mrf.mxu0
    %v1464 = vadd.f32 0.0, %v1463
    %1465 = vmatmul.f32.gmra.mxu0 %v1375
    %v1466 = vpop.f32.mrf.mxu0
    %v1467 = vadd.f32 0.0, %v1466
    %1468 = vmatmul.f32.gmra.mxu0 %v1376
    %v1469 = vpop.f32.mrf.mxu0
    %v1470 = vadd.f32 0.0, %v1469
    %1471 = vmatmul.f32.gmra.mxu0 %v1377
    %v1472 = vpop.f32.mrf.mxu0
    %v1473 = vadd.f32 0.0, %v1472
    %1474 = vmatmul.f32.gmra.mxu0 %v1378
    %v1475 = vpop.f32.mrf.mxu0
    %v1476 = vadd.f32 0.0, %v1475
    %1477 = vmatmul.f32.gmra.mxu0 %v1379
    %v1478 = vpop.f32.mrf.mxu0
    %v1479 = vadd.f32 0.0, %v1478
    %1480 = vmatmul.f32.gmra.mxu0 %v1380
    %v1481 = vpop.f32.mrf.mxu0
    %v1482 = vadd.f32 0.0, %v1481
    %1483 = vmatmul.f32.gmra.mxu0 %v1381
    %v1484 = vpop.f32.mrf.mxu0
    %v1485 = vadd.f32 0.0, %v1484
    %1486 = vmatmul.f32.gmra.mxu0 %v1382
    %v1487 = vpop.f32.mrf.mxu0
    %v1488 = vadd.f32 0.0, %v1487
    %1489 = vmatmul.f32.gmra.mxu0 %v1383
    %v1490 = vpop.f32.mrf.mxu0
    %v1491 = vadd.f32 0.0, %v1490
    %1492 = vmatmul.f32.gmra.mxu0 %v1384
    %v1493 = vpop.f32.mrf.mxu0
    %v1494 = vadd.f32 0.0, %v1493
    %1495 = vmatmul.f32.gmra.mxu0 %v1385
    %v1496 = vpop.f32.mrf.mxu0
    %v1497 = vadd.f32 0.0, %v1496
    %1498 = vdwg.mxu0
    %1499 = vset.pattern.permute.xlu0 7
    %1500 = vperm.xlu0 %1499, %v230
    %v1501 = vpop.permute.xlu0 %1500
    %1503 = vset.pattern.permute.xlu0 7
    %1504 = vperm.xlu0 %1503, %v233
    %v1505 = vpop.permute.xlu0 %1504
    %1507 = vset.pattern.permute.xlu0 7
    %1508 = vperm.xlu0 %1507, %v236
    %v1509 = vpop.permute.xlu0 %1508
    %1511 = vset.pattern.permute.xlu0 7
    %1512 = vperm.xlu0 %1511, %v239
    %v1513 = vpop.permute.xlu0 %1512
    %1515 = vset.pattern.permute.xlu0 7
    %1516 = vperm.xlu0 %1515, %v242
    %v1517 = vpop.permute.xlu0 %1516
    %1519 = vset.pattern.permute.xlu0 7
    %1520 = vperm.xlu0 %1519, %v245
    %v1521 = vpop.permute.xlu0 %1520
    %1523 = vset.pattern.permute.xlu0 7
    %1524 = vperm.xlu0 %1523, %v248
    %v1525 = vpop.permute.xlu0 %1524
    %1527 = vset.pattern.permute.xlu0 7
    %1528 = vperm.xlu0 %1527, %v251
    %v1529 = vpop.permute.xlu0 %1528
    %1531 = vset.pattern.permute.xlu0 7
    %1532 = vperm.xlu0 %1531, %v254
    %v1533 = vpop.permute.xlu0 %1532
    %1535 = vset.pattern.permute.xlu0 7
    %1536 = vperm.xlu0 %1535, %v257
    %v1537 = vpop.permute.xlu0 %1536
    %1539 = vset.pattern.permute.xlu0 7
    %1540 = vperm.xlu0 %1539, %v260
    %v1541 = vpop.permute.xlu0 %1540
    %1543 = vset.pattern.permute.xlu0 7
    %1544 = vperm.xlu0 %1543, %v263
    %v1545 = vpop.permute.xlu0 %1544
    %1547 = vset.pattern.permute.xlu0 7
    %1548 = vperm.xlu0 %1547, %v266
    %v1549 = vpop.permute.xlu0 %1548
    %1551 = vset.pattern.permute.xlu0 7
    %1552 = vperm.xlu0 %1551, %v269
    %v1553 = vpop.permute.xlu0 %1552
    %1555 = vset.pattern.permute.xlu0 7
    %1556 = vperm.xlu0 %1555, %v272
    %v1557 = vpop.permute.xlu0 %1556
    %1559 = vset.pattern.permute.xlu0 7
    %1560 = vperm.xlu0 %1559, %v275
    %v1561 = vpop.permute.xlu0 %1560
    %v1563 = vperm.slane %v293, 3
    %v1564 = vadd.f32 %v1501, %v1563
    %v1565 = vadd.f32 %v1505, %v1563
    %v1566 = vadd.f32 %v1509, %v1563
    %v1567 = vadd.f32 %v1513, %v1563
    %v1568 = vadd.f32 %v1517, %v1563
    %v1569 = vadd.f32 %v1521, %v1563
    %v1570 = vadd.f32 %v1525, %v1563
    %v1571 = vadd.f32 %v1529, %v1563
    %v1572 = vadd.f32 %v1533, %v1563
    %v1573 = vadd.f32 %v1537, %v1563
    %v1574 = vadd.f32 %v1541, %v1563
    %v1575 = vadd.f32 %v1545, %v1563
    %v1576 = vadd.f32 %v1549, %v1563
    %v1577 = vadd.f32 %v1553, %v1563
    %v1578 = vadd.f32 %v1557, %v1563
    %v1579 = vadd.f32 %v1561, %v1563
    %vm1580 = vcmp.ge.f32.partialorder %v1564, 0.0
    %vm1581 = vcmp.ge.f32.partialorder %v1565, 0.0
    %vm1582 = vcmp.ge.f32.partialorder %v1566, 0.0
    %vm1583 = vcmp.ge.f32.partialorder %v1567, 0.0
    %vm1584 = vcmp.ge.f32.partialorder %v1568, 0.0
    %vm1585 = vcmp.ge.f32.partialorder %v1569, 0.0
    %vm1586 = vcmp.ge.f32.partialorder %v1570, 0.0
    %vm1587 = vcmp.ge.f32.partialorder %v1571, 0.0
    %vm1588 = vcmp.ge.f32.partialorder %v1572, 0.0
    %vm1589 = vcmp.ge.f32.partialorder %v1573, 0.0
    %vm1590 = vcmp.ge.f32.partialorder %v1574, 0.0
    %vm1591 = vcmp.ge.f32.partialorder %v1575, 0.0
    %vm1592 = vcmp.ge.f32.partialorder %v1576, 0.0
    %vm1593 = vcmp.ge.f32.partialorder %v1577, 0.0
    %vm1594 = vcmp.ge.f32.partialorder %v1578, 0.0
    %vm1595 = vcmp.ge.f32.partialorder %v1579, 0.0
    %v1596 = vmul.f32 %v1564, 0.2
    %v1597 = vmul.f32 %v1565, 0.2
    %v1598 = vmul.f32 %v1566, 0.2
    %v1599 = vmul.f32 %v1567, 0.2
    %v1600 = vmul.f32 %v1568, 0.2
    %v1601 = vmul.f32 %v1569, 0.2
    %v1602 = vmul.f32 %v1570, 0.2
    %v1603 = vmul.f32 %v1571, 0.2
    %v1604 = vmul.f32 %v1572, 0.2
    %v1605 = vmul.f32 %v1573, 0.2
    %v1606 = vmul.f32 %v1574, 0.2
    %v1607 = vmul.f32 %v1575, 0.2
    %v1608 = vmul.f32 %v1576, 0.2
    %v1609 = vmul.f32 %v1577, 0.2
    %v1610 = vmul.f32 %v1578, 0.2
    %v1611 = vmul.f32 %v1579, 0.2
    %v1612 = vsel %vm1580, %v1564, %v1596
    %v1613 = vsel %vm1581, %v1565, %v1597
    %v1614 = vsel %vm1582, %v1566, %v1598
    %v1615 = vsel %vm1583, %v1567, %v1599
    %v1616 = vsel %vm1584, %v1568, %v1600
    %v1617 = vsel %vm1585, %v1569, %v1601
    %v1618 = vsel %vm1586, %v1570, %v1602
    %v1619 = vsel %vm1587, %v1571, %v1603
    %v1620 = vsel %vm1588, %v1572, %v1604
    %v1621 = vsel %vm1589, %v1573, %v1605
    %v1622 = vsel %vm1590, %v1574, %v1606
    %v1623 = vsel %vm1591, %v1575, %v1607
    %v1624 = vsel %vm1592, %v1576, %v1608
    %v1625 = vsel %vm1593, %v1577, %v1609
    %v1626 = vsel %vm1594, %v1578, %v1610
    %v1627 = vsel %vm1595, %v1579, %v1611
    %v1628 = vadd.f32 %v1612, %v309
    %v1629 = vadd.f32 %v1613, %v310
    %v1630 = vadd.f32 %v1614, %v311
    %v1631 = vadd.f32 %v1615, %v312
    %v1632 = vadd.f32 %v1616, %v313
    %v1633 = vadd.f32 %v1617, %v314
    %v1634 = vadd.f32 %v1618, %v315
    %v1635 = vadd.f32 %v1619, %v316
    %v1636 = vadd.f32 %v1620, %v317
    %v1637 = vadd.f32 %v1621, %v318
    %v1638 = vadd.f32 %v1622, %v319
    %v1639 = vadd.f32 %v1623, %v320
    %v1640 = vadd.f32 %v1624, %v321
    %v1641 = vadd.f32 %v1625, %v322
    %v1642 = vadd.f32 %v1626, %v323
    %v1643 = vadd.f32 %v1627, %v324
    %1644 = vmax.xlane.f32.xlu0 %v1628
    %v1645 = vpop.xlane.xlu0 %1644
    %1646 = vmax.xlane.f32.xlu0 %v1629
    %v1647 = vpop.xlane.xlu0 %1646
    %1648 = vmax.xlane.f32.xlu0 %v1630
    %v1649 = vpop.xlane.xlu0 %1648
    %1650 = vmax.xlane.f32.xlu0 %v1631
    %v1651 = vpop.xlane.xlu0 %1650
    %1652 = vmax.xlane.f32.xlu0 %v1632
    %v1653 = vpop.xlane.xlu0 %1652
    %1654 = vmax.xlane.f32.xlu0 %v1633
    %v1655 = vpop.xlane.xlu0 %1654
    %1656 = vmax.xlane.f32.xlu0 %v1634
    %v1657 = vpop.xlane.xlu0 %1656
    %1658 = vmax.xlane.f32.xlu0 %v1635
    %v1659 = vpop.xlane.xlu0 %1658
    %1660 = vmax.xlane.f32.xlu0 %v1636
    %v1661 = vpop.xlane.xlu0 %1660
    %1662 = vmax.xlane.f32.xlu0 %v1637
    %v1663 = vpop.xlane.xlu0 %1662
    %1664 = vmax.xlane.f32.xlu0 %v1638
    %v1665 = vpop.xlane.xlu0 %1664
    %1666 = vmax.xlane.f32.xlu0 %v1639
    %v1667 = vpop.xlane.xlu0 %1666
    %1668 = vmax.xlane.f32.xlu0 %v1640
    %v1669 = vpop.xlane.xlu0 %1668
    %1670 = vmax.xlane.f32.xlu0 %v1641
    %v1671 = vpop.xlane.xlu0 %1670
    %1672 = vmax.xlane.f32.xlu0 %v1642
    %v1673 = vpop.xlane.xlu0 %1672
    %1674 = vmax.xlane.f32.xlu0 %v1643
    %v1675 = vpop.xlane.xlu0 %1674
    %v1676 = vsub.f32 %v1628, %v1645
    %v1677 = vsub.f32 %v1629, %v1647
    %v1678 = vsub.f32 %v1630, %v1649
    %v1679 = vsub.f32 %v1631, %v1651
    %v1680 = vsub.f32 %v1632, %v1653
    %v1681 = vsub.f32 %v1633, %v1655
    %v1682 = vsub.f32 %v1634, %v1657
    %v1683 = vsub.f32 %v1635, %v1659
    %v1684 = vsub.f32 %v1636, %v1661
    %v1685 = vsub.f32 %v1637, %v1663
    %v1686 = vsub.f32 %v1638, %v1665
    %v1687 = vsub.f32 %v1639, %v1667
    %v1688 = vsub.f32 %v1640, %v1669
    %v1689 = vsub.f32 %v1641, %v1671
    %v1690 = vsub.f32 %v1642, %v1673
    %v1691 = vsub.f32 %v1643, %v1675
    %v1692 = vmul.f32 %v1676, 1.442695
    %v1693 = vpow.pop %v1692
    %v1694 = vmul.f32 %v1677, 1.442695
    %v1695 = vpow.pop %v1694
    %v1696 = vmul.f32 %v1678, 1.442695
    %v1697 = vpow.pop %v1696
    %v1698 = vmul.f32 %v1679, 1.442695
    %v1699 = vpow.pop %v1698
    %v1700 = vmul.f32 %v1680, 1.442695
    %v1701 = vpow.pop %v1700
    %v1702 = vmul.f32 %v1681, 1.442695
    %v1703 = vpow.pop %v1702
    %v1704 = vmul.f32 %v1682, 1.442695
    %v1705 = vpow.pop %v1704
    %v1706 = vmul.f32 %v1683, 1.442695
    %v1707 = vpow.pop %v1706
    %v1708 = vmul.f32 %v1684, 1.442695
    %v1709 = vpow.pop %v1708
    %v1710 = vmul.f32 %v1685, 1.442695
    %v1711 = vpow.pop %v1710
    %v1712 = vmul.f32 %v1686, 1.442695
    %v1713 = vpow.pop %v1712
    %v1714 = vmul.f32 %v1687, 1.442695
    %v1715 = vpow.pop %v1714
    %v1716 = vmul.f32 %v1688, 1.442695
    %v1717 = vpow.pop %v1716
    %v1718 = vmul.f32 %v1689, 1.442695
    %v1719 = vpow.pop %v1718
    %v1720 = vmul.f32 %v1690, 1.442695
    %v1721 = vpow.pop %v1720
    %v1722 = vmul.f32 %v1691, 1.442695
    %v1723 = vpow.pop %v1722
    %1724 = vadd.xlane.f32.xlu0 %v1693
    %v1725 = vpop.xlane.xlu0 %1724
    %1726 = vadd.xlane.f32.xlu0 %v1695
    %v1727 = vpop.xlane.xlu0 %1726
    %1728 = vadd.xlane.f32.xlu0 %v1697
    %v1729 = vpop.xlane.xlu0 %1728
    %1730 = vadd.xlane.f32.xlu0 %v1699
    %v1731 = vpop.xlane.xlu0 %1730
    %1732 = vadd.xlane.f32.xlu0 %v1701
    %v1733 = vpop.xlane.xlu0 %1732
    %1734 = vadd.xlane.f32.xlu0 %v1703
    %v1735 = vpop.xlane.xlu0 %1734
    %1736 = vadd.xlane.f32.xlu0 %v1705
    %v1737 = vpop.xlane.xlu0 %1736
    %1738 = vadd.xlane.f32.xlu0 %v1707
    %v1739 = vpop.xlane.xlu0 %1738
    %1740 = vadd.xlane.f32.xlu0 %v1709
    %v1741 = vpop.xlane.xlu0 %1740
    %1742 = vadd.xlane.f32.xlu0 %v1711
    %v1743 = vpop.xlane.xlu0 %1742
    %1744 = vadd.xlane.f32.xlu0 %v1713
    %v1745 = vpop.xlane.xlu0 %1744
    %1746 = vadd.xlane.f32.xlu0 %v1715
    %v1747 = vpop.xlane.xlu0 %1746
    %1748 = vadd.xlane.f32.xlu0 %v1717
    %v1749 = vpop.xlane.xlu0 %1748
    %1750 = vadd.xlane.f32.xlu0 %v1719
    %v1751 = vpop.xlane.xlu0 %1750
    %1752 = vadd.xlane.f32.xlu0 %v1721
    %v1753 = vpop.xlane.xlu0 %1752
    %1754 = vadd.xlane.f32.xlu0 %v1723
    %v1755 = vpop.xlane.xlu0 %1754
    %v1756 = vrcp.pop %v1725
    %v1757 = vrcp.pop %v1727
    %v1758 = vrcp.pop %v1729
    %v1759 = vrcp.pop %v1731
    %v1760 = vrcp.pop %v1733
    %v1761 = vrcp.pop %v1735
    %v1762 = vrcp.pop %v1737
    %v1763 = vrcp.pop %v1739
    %v1764 = vrcp.pop %v1741
    %v1765 = vrcp.pop %v1743
    %v1766 = vrcp.pop %v1745
    %v1767 = vrcp.pop %v1747
    %v1768 = vrcp.pop %v1749
    %v1769 = vrcp.pop %v1751
    %v1770 = vrcp.pop %v1753
    %v1771 = vrcp.pop %v1755
    %v1772 = vmul.f32 %v1693, %v1756
    %v1773 = vmul.f32 %v1695, %v1757
    %v1774 = vmul.f32 %v1697, %v1758
    %v1775 = vmul.f32 %v1699, %v1759
    %v1776 = vmul.f32 %v1701, %v1760
    %v1777 = vmul.f32 %v1703, %v1761
    %v1778 = vmul.f32 %v1705, %v1762
    %v1779 = vmul.f32 %v1707, %v1763
    %v1780 = vmul.f32 %v1709, %v1764
    %v1781 = vmul.f32 %v1711, %v1765
    %v1782 = vmul.f32 %v1713, %v1766
    %v1783 = vmul.f32 %v1715, %v1767
    %v1784 = vmul.f32 %v1717, %v1768
    %v1785 = vmul.f32 %v1719, %v1769
    %v1786 = vmul.f32 %v1721, %v1770
    %v1787 = vmul.f32 %v1723, %v1771
    %1788 = vrot.lane.b32.xlu0 %v108, 80
    %v1789 = vpop.permute.xlu0 %1788
    %1790 = vrot.lane.b32.xlu0 %v111, 80
    %v1791 = vpop.permute.xlu0 %1790
    %1792 = vrot.lane.b32.xlu0 %v114, 80
    %v1793 = vpop.permute.xlu0 %1792
    %1794 = vrot.lane.b32.xlu0 %v117, 80
    %v1795 = vpop.permute.xlu0 %1794
    %1796 = vrot.lane.b32.xlu0 %v120, 80
    %v1797 = vpop.permute.xlu0 %1796
    %1798 = vrot.lane.b32.xlu0 %v123, 80
    %v1799 = vpop.permute.xlu0 %1798
    %1800 = vrot.lane.b32.xlu0 %v126, 80
    %v1801 = vpop.permute.xlu0 %1800
    %1802 = vrot.lane.b32.xlu0 %v129, 80
    %v1803 = vpop.permute.xlu0 %1802
    %1804 = vrot.lane.b32.xlu0 %v132, 80
    %v1805 = vpop.permute.xlu0 %1804
    %1806 = vrot.lane.b32.xlu0 %v135, 80
    %v1807 = vpop.permute.xlu0 %1806
    %1808 = vrot.lane.b32.xlu0 %v138, 80
    %v1809 = vpop.permute.xlu0 %1808
    %1810 = vrot.lane.b32.xlu0 %v141, 80
    %v1811 = vpop.permute.xlu0 %1810
    %1812 = vrot.lane.b32.xlu0 %v144, 80
    %v1813 = vpop.permute.xlu0 %1812
    %1814 = vrot.lane.b32.xlu0 %v147, 80
    %v1815 = vpop.permute.xlu0 %1814
    %1816 = vrot.lane.b32.xlu0 %v150, 80
    %v1817 = vpop.permute.xlu0 %1816
    %1818 = vrot.lane.b32.xlu0 %v153, 80
    %v1819 = vpop.permute.xlu0 %1818
    %1836 = vmatpush.msra.mxu0 %v1819
    %1837 = vmatpush.msra.mxu0 %v1817
    %1838 = vmatpush.msra.mxu0 %v1815
    %1839 = vmatpush.msra.mxu0 %v1813
    %1840 = vmatpush.msra.mxu0 %v1811
    %1841 = vmatpush.msra.mxu0 %v1809
    %1842 = vmatpush.msra.mxu0 %v1807
    %1843 = vmatpush.msra.mxu0 %v1805
    %1844 = vmatpush.msra.mxu0 %v1803
    %1845 = vmatpush.msra.mxu0 %v1801
    %1846 = vmatpush.msra.mxu0 %v1799
    %1847 = vmatpush.msra.mxu0 %v1797
    %1848 = vmatpush.msra.mxu0 %v1795
    %1849 = vmatpush.msra.mxu0 %v1793
    %1850 = vmatpush.msra.mxu0 %v1791
    %1851 = vmatpush.msra.mxu0 %v1789
    %1852 = vmatmul.f32.gmra.mxu0 %v1772
    %v1853 = vpop.f32.mrf.mxu0
    %v1854 = vadd.f32 0.0, %v1853
    %1855 = vmatmul.f32.gmra.mxu0 %v1773
    %v1856 = vpop.f32.mrf.mxu0
    %v1857 = vadd.f32 0.0, %v1856
    %1858 = vmatmul.f32.gmra.mxu0 %v1774
    %v1859 = vpop.f32.mrf.mxu0
    %v1860 = vadd.f32 0.0, %v1859
    %1861 = vmatmul.f32.gmra.mxu0 %v1775
    %v1862 = vpop.f32.mrf.mxu0
    %v1863 = vadd.f32 0.0, %v1862
    %1864 = vmatmul.f32.gmra.mxu0 %v1776
    %v1865 = vpop.f32.mrf.mxu0
    %v1866 = vadd.f32 0.0, %v1865
    %1867 = vmatmul.f32.gmra.mxu0 %v1777
    %v1868 = vpop.f32.mrf.mxu0
    %v1869 = vadd.f32 0.0, %v1868
    %1870 = vmatmul.f32.gmra.mxu0 %v1778
    %v1871 = vpop.f32.mrf.mxu0
    %v1872 = vadd.f32 0.0, %v1871
    %1873 = vmatmul.f32.gmra.mxu0 %v1779
    %v1874 = vpop.f32.mrf.mxu0
    %v1875 = vadd.f32 0.0, %v1874
    %1876 = vmatmul.f32.gmra.mxu0 %v1780
    %v1877 = vpop.f32.mrf.mxu0
    %v1878 = vadd.f32 0.0, %v1877
    %1879 = vmatmul.f32.gmra.mxu0 %v1781
    %v1880 = vpop.f32.mrf.mxu0
    %v1881 = vadd.f32 0.0, %v1880
    %1882 = vmatmul.f32.gmra.mxu0 %v1782
    %v1883 = vpop.f32.mrf.mxu0
    %v1884 = vadd.f32 0.0, %v1883
    %1885 = vmatmul.f32.gmra.mxu0 %v1783
    %v1886 = vpop.f32.mrf.mxu0
    %v1887 = vadd.f32 0.0, %v1886
    %1888 = vmatmul.f32.gmra.mxu0 %v1784
    %v1889 = vpop.f32.mrf.mxu0
    %v1890 = vadd.f32 0.0, %v1889
    %1891 = vmatmul.f32.gmra.mxu0 %v1785
    %v1892 = vpop.f32.mrf.mxu0
    %v1893 = vadd.f32 0.0, %v1892
    %1894 = vmatmul.f32.gmra.mxu0 %v1786
    %v1895 = vpop.f32.mrf.mxu0
    %v1896 = vadd.f32 0.0, %v1895
    %1897 = vmatmul.f32.gmra.mxu0 %v1787
    %v1898 = vpop.f32.mrf.mxu0
    %v1899 = vadd.f32 0.0, %v1898
    %1900 = vdwg.mxu0
    %1917 = vrot.lane.b32.xlu0 %v1050, 16
    %v1918 = vpop.permute.xlu0 %1917
    %1919 = vrot.lane.b32.xlu0 %v1053, 16
    %v1920 = vpop.permute.xlu0 %1919
    %1921 = vrot.lane.b32.xlu0 %v1056, 16
    %v1922 = vpop.permute.xlu0 %1921
    %1923 = vrot.lane.b32.xlu0 %v1059, 16
    %v1924 = vpop.permute.xlu0 %1923
    %1925 = vrot.lane.b32.xlu0 %v1062, 16
    %v1926 = vpop.permute.xlu0 %1925
    %1927 = vrot.lane.b32.xlu0 %v1065, 16
    %v1928 = vpop.permute.xlu0 %1927
    %1929 = vrot.lane.b32.xlu0 %v1068, 16
    %v1930 = vpop.permute.xlu0 %1929
    %1931 = vrot.lane.b32.xlu0 %v1071, 16
    %v1932 = vpop.permute.xlu0 %1931
    %1933 = vrot.lane.b32.xlu0 %v1074, 16
    %v1934 = vpop.permute.xlu0 %1933
    %1935 = vrot.lane.b32.xlu0 %v1077, 16
    %v1936 = vpop.permute.xlu0 %1935
    %1937 = vrot.lane.b32.xlu0 %v1080, 16
    %v1938 = vpop.permute.xlu0 %1937
    %1939 = vrot.lane.b32.xlu0 %v1083, 16
    %v1940 = vpop.permute.xlu0 %1939
    %1941 = vrot.lane.b32.xlu0 %v1086, 16
    %v1942 = vpop.permute.xlu0 %1941
    %1943 = vrot.lane.b32.xlu0 %v1089, 16
    %v1944 = vpop.permute.xlu0 %1943
    %1945 = vrot.lane.b32.xlu0 %v1092, 16
    %v1946 = vpop.permute.xlu0 %1945
    %1947 = vrot.lane.b32.xlu0 %v1095, 16
    %v1948 = vpop.permute.xlu0 %1947
    %1981 = vrot.lane.b32.xlu0 %v1452, 32
    %v1982 = vpop.permute.xlu0 %1981
    %1983 = vrot.lane.b32.xlu0 %v1455, 32
    %v1984 = vpop.permute.xlu0 %1983
    %1985 = vrot.lane.b32.xlu0 %v1458, 32
    %v1986 = vpop.permute.xlu0 %1985
    %1987 = vrot.lane.b32.xlu0 %v1461, 32
    %v1988 = vpop.permute.xlu0 %1987
    %1989 = vrot.lane.b32.xlu0 %v1464, 32
    %v1990 = vpop.permute.xlu0 %1989
    %1991 = vrot.lane.b32.xlu0 %v1467, 32
    %v1992 = vpop.permute.xlu0 %1991
    %1993 = vrot.lane.b32.xlu0 %v1470, 32
    %v1994 = vpop.permute.xlu0 %1993
    %1995 = vrot.lane.b32.xlu0 %v1473, 32
    %v1996 = vpop.permute.xlu0 %1995
    %1997 = vrot.lane.b32.xlu0 %v1476, 32
    %v1998 = vpop.permute.xlu0 %1997
    %1999 = vrot.lane.b32.xlu0 %v1479, 32
    %v2000 = vpop.permute.xlu0 %1999
    %2001 = vrot.lane.b32.xlu0 %v1482, 32
    %v2002 = vpop.permute.xlu0 %2001
    %2003 = vrot.lane.b32.xlu0 %v1485, 32
    %v2004 = vpop.permute.xlu0 %2003
    %2005 = vrot.lane.b32.xlu0 %v1488, 32
    %v2006 = vpop.permute.xlu0 %2005
    %2007 = vrot.lane.b32.xlu0 %v1491, 32
    %v2008 = vpop.permute.xlu0 %2007
    %2009 = vrot.lane.b32.xlu0 %v1494, 32
    %v2010 = vpop.permute.xlu0 %2009
    %2011 = vrot.lane.b32.xlu0 %v1497, 32
    %v2012 = vpop.permute.xlu0 %2011
    %2045 = vrot.lane.b32.xlu0 %v1854, 48
    %v2046 = vpop.permute.xlu0 %2045
    %2047 = vrot.lane.b32.xlu0 %v1857, 48
    %v2048 = vpop.permute.xlu0 %2047
    %2049 = vrot.lane.b32.xlu0 %v1860, 48
    %v2050 = vpop.permute.xlu0 %2049
    %2051 = vrot.lane.b32.xlu0 %v1863, 48
    %v2052 = vpop.permute.xlu0 %2051
    %2053 = vrot.lane.b32.xlu0 %v1866, 48
    %v2054 = vpop.permute.xlu0 %2053
    %2055 = vrot.lane.b32.xlu0 %v1869, 48
    %v2056 = vpop.permute.xlu0 %2055
    %2057 = vrot.lane.b32.xlu0 %v1872, 48
    %v2058 = vpop.permute.xlu0 %2057
    %2059 = vrot.lane.b32.xlu0 %v1875, 48
    %v2060 = vpop.permute.xlu0 %2059
    %2061 = vrot.lane.b32.xlu0 %v1878, 48
    %v2062 = vpop.permute.xlu0 %2061
    %2063 = vrot.lane.b32.xlu0 %v1881, 48
    %v2064 = vpop.permute.xlu0 %2063
    %2065 = vrot.lane.b32.xlu0 %v1884, 48
    %v2066 = vpop.permute.xlu0 %2065
    %2067 = vrot.lane.b32.xlu0 %v1887, 48
    %v2068 = vpop.permute.xlu0 %2067
    %2069 = vrot.lane.b32.xlu0 %v1890, 48
    %v2070 = vpop.permute.xlu0 %2069
    %2071 = vrot.lane.b32.xlu0 %v1893, 48
    %v2072 = vpop.permute.xlu0 %2071
    %2073 = vrot.lane.b32.xlu0 %v1896, 48
    %v2074 = vpop.permute.xlu0 %2073
    %2075 = vrot.lane.b32.xlu0 %v1899, 48
    %v2076 = vpop.permute.xlu0 %2075
    %vm2093 = vcmask 130048
    %v2094 = vsel %vm2093, %v648, %v1918
    %v2095 = vsel %vm2093, %v651, %v1920
    %v2096 = vsel %vm2093, %v654, %v1922
    %v2097 = vsel %vm2093, %v657, %v1924
    %v2098 = vsel %vm2093, %v660, %v1926
    %v2099 = vsel %vm2093, %v663, %v1928
    %v2100 = vsel %vm2093, %v666, %v1930
    %v2101 = vsel %vm2093, %v669, %v1932
    %v2102 = vsel %vm2093, %v672, %v1934
    %v2103 = vsel %vm2093, %v675, %v1936
    %v2104 = vsel %vm2093, %v678, %v1938
    %v2105 = vsel %vm2093, %v681, %v1940
    %v2106 = vsel %vm2093, %v684, %v1942
    %v2107 = vsel %vm2093, %v687, %v1944
    %v2108 = vsel %vm2093, %v690, %v1946
    %v2109 = vsel %vm2093, %v693, %v1948
    %vm2110 = vcmask 261120
    %v2111 = vsel %vm2110, %v2094, %v1982
    %v2112 = vsel %vm2110, %v2095, %v1984
    %v2113 = vsel %vm2110, %v2096, %v1986
    %v2114 = vsel %vm2110, %v2097, %v1988
    %v2115 = vsel %vm2110, %v2098, %v1990
    %v2116 = vsel %vm2110, %v2099, %v1992
    %v2117 = vsel %vm2110, %v2100, %v1994
    %v2118 = vsel %vm2110, %v2101, %v1996
    %v2119 = vsel %vm2110, %v2102, %v1998
    %v2120 = vsel %vm2110, %v2103, %v2000
    %v2121 = vsel %vm2110, %v2104, %v2002
    %v2122 = vsel %vm2110, %v2105, %v2004
    %v2123 = vsel %vm2110, %v2106, %v2006
    %v2124 = vsel %vm2110, %v2107, %v2008
    %v2125 = vsel %vm2110, %v2108, %v2010
    %v2126 = vsel %vm2110, %v2109, %v2012
    %vm2127 = vcmask 392192
    %v2128 = vsel %vm2127, %v2111, %v2046
    %v2129 = vsel %vm2127, %v2112, %v2048
    %v2130 = vsel %vm2127, %v2113, %v2050
    %v2131 = vsel %vm2127, %v2114, %v2052
    %v2132 = vsel %vm2127, %v2115, %v2054
    %v2133 = vsel %vm2127, %v2116, %v2056
    %v2134 = vsel %vm2127, %v2117, %v2058
    %v2135 = vsel %vm2127, %v2118, %v2060
    %v2136 = vsel %vm2127, %v2119, %v2062
    %v2137 = vsel %vm2127, %v2120, %v2064
    %v2138 = vsel %vm2127, %v2121, %v2066
    %v2139 = vsel %vm2127, %v2122, %v2068
    %v2140 = vsel %vm2127, %v2123, %v2070
    %v2141 = vsel %vm2127, %v2124, %v2072
    %v2142 = vsel %vm2127, %v2125, %v2074
    %v2143 = vsel %vm2127, %v2126, %v2076
    %v2144 = vld [vmem:[%s3] sm:$0xff]
    %v2145 = vld [vmem:[%s3 + $0x10] sm:$0xff]
    %v2146 = vld [vmem:[%s3 + $0x20] sm:$0xff]
    %v2147 = vld [vmem:[%s3 + $0x30] sm:$0xff]
    %v2148 = vld [vmem:[%s3 + $0x40] sm:$0xff]
    %v2149 = vld [vmem:[%s3 + $0x50] sm:$0xff]
    %v2150 = vld [vmem:[%s3 + $0x60] sm:$0xff]
    %v2151 = vld [vmem:[%s3 + $0x70] sm:$0xff]
    %v2152 = vld [vmem:[%s3 + $0x80] ss:$0 sm:$0xff]
    %v2154 = vsel %vm163, %v2128, 0
    %v2157 = vsel %vm163, %v2129, 0
    %v2160 = vsel %vm163, %v2130, 0
    %v2163 = vsel %vm163, %v2131, 0
    %v2166 = vsel %vm163, %v2132, 0
    %v2169 = vsel %vm163, %v2133, 0
    %v2172 = vsel %vm163, %v2134, 0
    %v2175 = vsel %vm163, %v2135, 0
    %v2178 = vsel %vm163, %v2136, 0
    %v2181 = vsel %vm163, %v2137, 0
    %v2184 = vsel %vm163, %v2138, 0
    %v2187 = vsel %vm163, %v2139, 0
    %v2190 = vsel %vm163, %v2140, 0
    %v2193 = vsel %vm163, %v2141, 0
    %v2196 = vsel %vm163, %v2142, 0
    %v2199 = vsel %vm163, %v2143, 0
    %2201 = vmatpush.msra.mxu0 0.0
    %2202 = vmatpush.msra.mxu0 0.0
    %2203 = vmatpush.msra.mxu0 0.0
    %2204 = vmatpush.msra.mxu0 0.0
    %2205 = vmatpush.msra.mxu0 0.0
    %2206 = vmatpush.msra.mxu0 0.0
    %2207 = vmatpush.msra.mxu0 0.0
    %2208 = vmatpush.msra.mxu0 0.0
    %2209 = vmatpush.msra.mxu0 %v2151
    %2210 = vmatpush.msra.mxu0 %v2150
    %2211 = vmatpush.msra.mxu0 %v2149
    %2212 = vmatpush.msra.mxu0 %v2148
    %2213 = vmatpush.msra.mxu0 %v2147
    %2214 = vmatpush.msra.mxu0 %v2146
    %2215 = vmatpush.msra.mxu0 %v2145
    %2216 = vmatpush.msra.mxu0 %v2144
    %2217 = vmatmul.f32.gmra.mxu0 %v2154
    %v2218 = vpop.f32.mrf.mxu0
    %v2219 = vadd.f32 %v2152, %v2218
    %2220 = vmatmul.f32.gmra.mxu0 %v2157
    %v2221 = vpop.f32.mrf.mxu0
    %v2222 = vadd.f32 %v2152, %v2221
    %2223 = vmatmul.f32.gmra.mxu0 %v2160
    %v2224 = vpop.f32.mrf.mxu0
    %v2225 = vadd.f32 %v2152, %v2224
    %2226 = vmatmul.f32.gmra.mxu0 %v2163
    %v2227 = vpop.f32.mrf.mxu0
    %v2228 = vadd.f32 %v2152, %v2227
    %2229 = vmatmul.f32.gmra.mxu0 %v2166
    %v2230 = vpop.f32.mrf.mxu0
    %v2231 = vadd.f32 %v2152, %v2230
    %2232 = vmatmul.f32.gmra.mxu0 %v2169
    %v2233 = vpop.f32.mrf.mxu0
    %v2234 = vadd.f32 %v2152, %v2233
    %2235 = vmatmul.f32.gmra.mxu0 %v2172
    %v2236 = vpop.f32.mrf.mxu0
    %v2237 = vadd.f32 %v2152, %v2236
    %2238 = vmatmul.f32.gmra.mxu0 %v2175
    %v2239 = vpop.f32.mrf.mxu0
    %v2240 = vadd.f32 %v2152, %v2239
    %2241 = vmatmul.f32.gmra.mxu0 %v2178
    %v2242 = vpop.f32.mrf.mxu0
    %v2243 = vadd.f32 %v2152, %v2242
    %2244 = vmatmul.f32.gmra.mxu0 %v2181
    %v2245 = vpop.f32.mrf.mxu0
    %v2246 = vadd.f32 %v2152, %v2245
    %2247 = vmatmul.f32.gmra.mxu0 %v2184
    %v2248 = vpop.f32.mrf.mxu0
    %v2249 = vadd.f32 %v2152, %v2248
    %2250 = vmatmul.f32.gmra.mxu0 %v2187
    %v2251 = vpop.f32.mrf.mxu0
    %v2252 = vadd.f32 %v2152, %v2251
    %2253 = vmatmul.f32.gmra.mxu0 %v2190
    %v2254 = vpop.f32.mrf.mxu0
    %v2255 = vadd.f32 %v2152, %v2254
    %2256 = vmatmul.f32.gmra.mxu0 %v2193
    %v2257 = vpop.f32.mrf.mxu0
    %v2258 = vadd.f32 %v2152, %v2257
    %2259 = vmatmul.f32.gmra.mxu0 %v2196
    %v2260 = vpop.f32.mrf.mxu0
    %v2261 = vadd.f32 %v2152, %v2260
    %2262 = vmatmul.f32.gmra.mxu0 %v2199
    %v2263 = vpop.f32.mrf.mxu0
    %v2264 = vadd.f32 %v2152, %v2263
    %2265 = vdwg.mxu0
    %2266 = vst [vmem:[#allocation2] sm:$0xff] %v2219
    %2267 = vst [vmem:[#allocation2 + $0x8] sm:$0xff] %v2222
    %2268 = vst [vmem:[#allocation2 + $0x10] sm:$0xff] %v2225
    %2269 = vst [vmem:[#allocation2 + $0x18] sm:$0xff] %v2228
    %2270 = vst [vmem:[#allocation2 + $0x20] sm:$0xff] %v2231
    %2271 = vst [vmem:[#allocation2 + $0x28] sm:$0xff] %v2234
    %2272 = vst [vmem:[#allocation2 + $0x30] sm:$0xff] %v2237
    %2273 = vst [vmem:[#allocation2 + $0x38] sm:$0xff] %v2240
    %2274 = vst [vmem:[#allocation2 + $0x40] sm:$0xff] %v2243
    %2275 = vst [vmem:[#allocation2 + $0x48] sm:$0xff] %v2246
    %2276 = vst [vmem:[#allocation2 + $0x50] sm:$0xff] %v2249
    %2277 = vst [vmem:[#allocation2 + $0x58] sm:$0xff] %v2252
    %2278 = vst [vmem:[#allocation2 + $0x60] sm:$0xff] %v2255
    %2279 = vst [vmem:[#allocation2 + $0x68] sm:$0xff] %v2258
    %2280 = vst [vmem:[#allocation2 + $0x70] sm:$0xff] %v2261
    %2281 = vst [vmem:[#allocation2 + $0x78] sm:$0xff] %v2264
    // Predicated region
    $region18: #{_call_kernel.1} parent=1 // pred_check
      _
    $region19: #{_call_kernel.1} parent=1 // pred_check_branch
      %2283 = sbr.rel (0) target = $region21
    $region20: #{_call_kernel.1} parent=1 // pred_region
      %2285 = vsyncadd [#allocation3], 0
      %s2286 = sshll.u32 [#allocation2], 4
      %s2287 = int_to_ptr.vmem [resolvable:$true] %s2286
      %s2288 = sshll.u32 %s4, 4
      %s2289 = int_to_ptr.hbm [resolvable:$true] %s2288
      %2294 = dma.vmem_to_hbm [thread:$0]  %s2287, 2048, %s2289, [#allocation3], 128, 128, 8
    $region21: #{_call_kernel.1} parent=1 // pred_fallthru
      _
    // Predicated region
    $region22: #{_call_kernel.1} parent=1 // pred_check
      _
    $region23: #{_call_kernel.1} parent=1 // pred_check_branch
      %2296 = sbr.rel (0) target = $region25
    $region24: #{_call_kernel.1} parent=1 // pred_region
      %2298 = dma.done [#allocation3], 2048
    $region25: #{_call_kernel.1} parent=1 // pred_fallthru
      _
    %2299 = vsyncpa [#allocation3], 1

</llo_original>
